<compile_context>
chip_gen: v7x
topology: tpu7x:2x2x1
jax: 0.10.0
libtpu: 0.0.40
codegen_flags: <defaults>
</compile_context>

<pallas_src>
import math

import jax
import jax.numpy as jnp
from jax import lax
from jax.experimental import pallas as pl
from jax.experimental.pallas import tpu as pltpu

NEG_INF = float('-inf')


def _softmax(x, axis):
    m = jnp.max(x, axis=axis, keepdims=True)
    e = jnp.exp(x - m)
    return e / jnp.sum(e, axis=axis, keepdims=True)


# ---------------------------------------------------------------------------
# Pallas kernel
# ---------------------------------------------------------------------------
def _encoder_kernel(q_ref, o_ref, qlen_ref, olen_ref, mw_ref, mb_ref, wh_ref, bh_ref,
                    fq_ref, fo_ref):
    q = q_ref[...]                      # [bb, Lq, D]
    o = o_ref[...]                      # [bb, Lo, D]
    bb, Lq, D = q.shape
    Lo = o.shape[1]

    qlen = qlen_ref[...]                # [bb, 1, 1] int32
    olen = olen_ref[...]                # [bb, 1, 1] int32

    # Validity masks built in-kernel from sequence lengths (replaces 4 mask inputs).
    q_valid   = lax.broadcasted_iota(jnp.int32, (bb, Lq, Lo), 1) < qlen
    o_valid   = lax.broadcasted_iota(jnp.int32, (bb, Lq, Lo), 2) < olen
    q_valid_t = lax.broadcasted_iota(jnp.int32, (bb, Lo, Lq), 2) < qlen
    o_valid_t = lax.broadcasted_iota(jnp.int32, (bb, Lo, Lq), 1) < olen

    # Fused projection for the three blocks (max / mean / align): one MXU matmul.
    qp_all = jnp.einsum('bld,ed->ble', q, mw_ref[...],
                        preferred_element_type=jnp.float32) + mb_ref[...]      # [bb, Lq, 3D]

    sq_list, so_list = [], []
    for i, mode in enumerate(('max', 'mean', 'align')):
        qp = qp_all[:, :, i * D:(i + 1) * D]                                   # [bb, Lq, D]
        # Single affinity matmul per block; transposed view via XLU, not a 2nd matmul.
        aff = jnp.einsum('bqd,bkd->bqk', qp, o,
                         preferred_element_type=jnp.float32)                   # [bb, Lq, Lo]
        aff_t = jnp.swapaxes(aff, 1, 2)                                        # [bb, Lo, Lq]

        if mode == 'align':
            mao = jnp.where(o_valid, aff, NEG_INF)         # invalid option cols -> -inf
            maq_t = jnp.where(q_valid_t, aff_t, NEG_INF)   # invalid query rows  -> -inf (transposed)
            qw = _softmax(mao, axis=2)                                         # [bb, Lq, Lo]
            sq = jnp.einsum('bqk,bkd->bqd', qw, o, preferred_element_type=jnp.float32)
            ow_t = _softmax(maq_t, axis=2)                                     # [bb, Lo, Lq]
            so = jnp.einsum('bkq,bqd->bkd', ow_t, q, preferred_element_type=jnp.float32)
        else:
            maq = jnp.where(q_valid, aff, NEG_INF)
            mao_t = jnp.where(o_valid_t, aff_t, NEG_INF)
            red = jnp.max if mode == 'max' else jnp.mean
            qw = _softmax(red(maq, axis=2, keepdims=True), axis=1)             # [bb, Lq, 1]
            ow = _softmax(red(mao_t, axis=2, keepdims=True), axis=1)           # [bb, Lo, 1]
            sq, so = qw * q, ow * o
        sq_list.append(sq)
        so_list.append(so)

    wh = wh_ref[...]    # [9, 7D]  fused fcc/fcm/fcs weights of all three blocks
    bh = bh_ref[...]    # [1, 9]

    def heads(summaries, orig):
        # features: [s_max, s_mean, s_align, x, s_max*x, s_mean*x, s_align*x] -> [bb, L, 7D]
        feat = jnp.concatenate(summaries + [orig] + [s * orig for s in summaries], axis=-1)
        out = jnp.einsum('bld,od->blo', feat, wh, preferred_element_type=jnp.float32) + bh
        return jnp.maximum(out, 0.0)                                           # [bb, L, 9]

    fq_ref[...] = heads(sq_list, q)
    fo_ref[...] = heads(so_list, o)


# ---------------------------------------------------------------------------
# Wrapper: parameter fusion + pallas_call
# ---------------------------------------------------------------------------
def _build_fused_params(params, D):
    Mw, Mb, fccw, fccb, fcmw, fcmb, fcsw, fcsb = params
    mw_all = Mw.reshape(3 * D, D)                  # stacked projection weights [3D, D]
    mb_all = Mb.reshape(1, 3 * D)                  # stacked projection biases  [1, 3D]

    # Block-structured heads weight [9, 7D] over features
    # [s_max | s_mean | s_align | x | s_max*x | s_mean*x | s_align*x].
    wh = jnp.zeros((9, 7 * D), jnp.float32)
    bh = jnp.zeros((1, 9), jnp.float32)
    for i in range(3):
        # c head: fcc(cat([summary_i, x]))
        wh = wh.at[3 * i, i * D:(i + 1) * D].set(fccw[i, 0, :D])
        wh = wh.at[3 * i, 3 * D:4 * D].set(fccw[i, 0, D:])
        # m head: fcm(summary_i * x)
        wh = wh.at[3 * i + 1, (4 + i) * D:(5 + i) * D].set(fcmw[i, 0, :])
        # s head: fcs(summary_i - x) = summary_i @ w - x @ w
        wh = wh.at[3 * i + 2, i * D:(i + 1) * D].set(fcsw[i, 0, :])
        wh = wh.at[3 * i + 2, 3 * D:4 * D].set(-fcsw[i, 0, :])
        bh = bh.at[0, 3 * i].set(fccb[i, 0, 0])
        bh = bh.at[0, 3 * i + 1].set(fcmb[i, 0, 0])
        bh = bh.at[0, 3 * i + 2].set(fcsb[i, 0, 0])
    return mw_all, mb_all, wh, bh


def co_attention_encoder(query, query_lens, option, option_lens, params, *, block_b=1):
    B, Lq, D = query.shape
    Lo = option.shape[1]
    assert B % block_b == 0, "block_b must divide the batch size"
    bb = block_b

    mw_all, mb_all, wh, bh = _build_fused_params(params, D)
    qlens = query_lens.reshape(B, 1, 1).astype(jnp.int32)
    olens = option_lens.reshape(B, 1, 1).astype(jnp.int32)

    def batch_spec(L, W):
        return pl.BlockSpec((bb, L, W), lambda b: (b, 0, 0))

    def shared_spec(shape):
        return pl.BlockSpec(shape, lambda b: (0,) * len(shape))

    feat_q, feat_o = pl.pallas_call(
        _encoder_kernel,
        out_shape=(jax.ShapeDtypeStruct((B, Lq, 9), jnp.float32),
                   jax.ShapeDtypeStruct((B, Lo, 9), jnp.float32)),
        grid_spec=pltpu.PrefetchScalarGridSpec(
            num_scalar_prefetch=0,
            grid=(B // bb,),
            in_specs=[
                batch_spec(Lq, D),           # query
                batch_spec(Lo, D),           # option
                batch_spec(1, 1),            # query lens
                batch_spec(1, 1),            # option lens
                shared_spec((3 * D, D)),     # fused projection weight
                shared_spec((1, 3 * D)),     # fused projection bias
                shared_spec((9, 7 * D)),     # fused heads weight
                shared_spec((1, 9)),         # fused heads bias
            ],
            out_specs=(batch_spec(Lq, 9), batch_spec(Lo, 9)),
        ),
        compiler_params=pltpu.CompilerParams(
            dimension_semantics=("parallel",),
            vmem_limit_bytes=64 * 1024 * 1024,
        ),
    )(query, option, qlens, olens, mw_all, mb_all, wh, bh)

    # D passthrough columns are concatenated outside the kernel (pure layout, no compute).
    new_query = jnp.concatenate([query, feat_q], axis=-1)     # [B, Lq, D + 9]
    new_option = jnp.concatenate([option, feat_o], axis=-1)   # [B, Lo, D + 9]
    return new_query, new_option


# ---------------------------------------------------------------------------
# Pure-JAX reference (mirrors the PyTorch module with the un-fused parameters)
# ---------------------------------------------------------------------------
def _length_mask(lens, L):
    pos = jnp.arange(L)[None, :]
    return (pos < lens[:, None]).astype(jnp.float32)          # [B, L]


def _co_attention_ref(query, option, qmask, omask, mode,
                      Mw, Mb, fccw, fccb, fcmw, fcmb, fcsw, fcsb):
    qp = query @ Mw.T + Mb
    affinity = jnp.einsum('bqd,bkd->bqk', qp, option)
    maq = jnp.where(qmask[:, :, None] == 0.0, -jnp.inf, affinity)
    mao = jnp.where(omask[:, None, :] == 0.0, -jnp.inf, affinity)
    if mode == 'mean':
        qw = jax.nn.softmax(jnp.mean(maq, axis=2), axis=-1)
        sq = qw[:, :, None] * query
        ow = jax.nn.softmax(jnp.mean(mao, axis=1), axis=-1)
        so = ow[:, :, None] * option
    elif mode == 'max':
        qw = jax.nn.softmax(jnp.max(maq, axis=2), axis=-1)
        sq = qw[:, :, None] * query
        ow = jax.nn.softmax(jnp.max(mao, axis=1), axis=-1)
        so = ow[:, :, None] * option
    else:  # 'align'
        qw = jax.nn.softmax(mao, axis=2)
        sq = jnp.einsum('bqk,bkd->bqd', qw, option)
        ow = jax.nn.softmax(maq, axis=1)
        so = jnp.einsum('bqk,bqd->bkd', ow, query)

    def head(summary, orig):
        c = jax.nn.relu(jnp.concatenate([summary, orig], -1) @ fccw.T + fccb)
        m = jax.nn.relu((summary * orig) @ fcmw.T + fcmb)
        s = jax.nn.relu((summary - orig) @ fcsw.T + fcsb)
        return jnp.concatenate([c, m, s], -1)

    return head(sq, query), head(so, option)


def reference(query, query_lens, option, option_lens, params):
    Mw, Mb, fccw, fccb, fcmw, fcmb, fcsw, fcsb = params
    qmask = _length_mask(query_lens, query.shape[1])
    omask = _length_mask(option_lens, option.shape[1])
    q_parts, o_parts = [query], [option]
    for i, mode in enumerate(('max', 'mean', 'align')):
        aq, ao = _co_attention_ref(query, option, qmask, omask, mode,
                                   Mw[i], Mb[i], fccw[i], fccb[i],
                                   fcmw[i], fcmb[i], fcsw[i], fcsb[i])
        q_parts.append(aq)
        o_parts.append(ao)
    return jnp.concatenate(q_parts, -1), jnp.concatenate(o_parts, -1)


def init_params(key, D):
    """Deterministic init matching nn.Linear's default U(-1/sqrt(fan_in), 1/sqrt(fan_in)).
    Parameters of the three CoAttention blocks (max, mean, align) are stacked on axis 0."""
    ks = jax.random.split(key, 24)

    def lin(kw, kb, out_dim, in_dim):
        bound = 1.0 / math.sqrt(in_dim)
        w = jax.random.uniform(kw, (out_dim, in_dim), jnp.float32, -bound, bound)
        b = jax.random.uniform(kb, (1, out_dim), jnp.float32, -bound, bound)
        return w, b

    Mw, Mb, fccw, fccb, fcmw, fcmb, fcsw, fcsb = ([] for _ in range(8))
    idx = 0
    for _ in range(3):
        w, b = lin(ks[idx], ks[idx + 1], D, D); idx += 2
        Mw.append(w); Mb.append(b)                       # (D, D), (1, D)
        w, b = lin(ks[idx], ks[idx + 1], 1, 2 * D); idx += 2
        fccw.append(w); fccb.append(b)                   # (1, 2D), (1, 1)
        w, b = lin(ks[idx], ks[idx + 1], 1, D); idx += 2
        fcmw.append(w); fcmb.append(b)                   # (1, D), (1, 1)
        w, b = lin(ks[idx], ks[idx + 1], 1, D); idx += 2
        fcsw.append(w); fcsb.append(b)                   # (1, D), (1, 1)

    stack = lambda xs: jnp.stack(xs, axis=0)
    return tuple(stack(p) for p in (Mw, Mb, fccw, fccb, fcmw, fcmb, fcsw, fcsb))


if __name__ == "__main__":
    B, Lq, Lo, D = 2, 8, 8, 32

    key = jax.random.PRNGKey(0)
    kq, ko = jax.random.split(key)
    query = jax.random.normal(kq, (B, Lq, D), jnp.float32)
    option = jax.random.normal(ko, (B, Lo, D), jnp.float32)
    query_lens = jnp.array([5, 8], dtype=jnp.int32)
    option_lens = jnp.array([8, 3], dtype=jnp.int32)

    params = init_params(jax.random.PRNGKey(42), D)

    new_q, new_o = co_attention_encoder(query, query_lens, option, option_lens, params)
    jax.block_until_ready((new_q, new_o))

    assert new_q.shape == (B, Lq, D + 9) and new_o.shape == (B, Lo, D + 9)

    ref_q, ref_o = reference(query, query_lens, option, option_lens, params)
    assert jnp.allclose(new_q, ref_q, rtol=1e-4, atol=1e-4), "query output mismatch"
    assert jnp.allclose(new_o, ref_o, rtol=1e-4, atol=1e-4), "option output mismatch"

    print("KERNEL_OK")
</pallas_src>

<mosaic_0001>
module attributes {stable_mosaic.version = 11 : i64} {
  func.func @_encoder_kernel(%arg0: i32, %arg1: memref<1x8x32xf32, #tpu.memory_space<vmem>>, %arg2: memref<1x8x32xf32, #tpu.memory_space<vmem>>, %arg3: memref<1x1x1xi32, #tpu.memory_space<vmem>>, %arg4: memref<1x1x1xi32, #tpu.memory_space<vmem>>, %arg5: memref<96x32xf32, #tpu.memory_space<vmem>>, %arg6: memref<1x96xf32, #tpu.memory_space<vmem>>, %arg7: memref<9x224xf32, #tpu.memory_space<vmem>>, %arg8: memref<1x9xf32, #tpu.memory_space<vmem>>, %arg9: memref<1x8x9xf32, #tpu.memory_space<vmem>>, %arg10: memref<1x8x9xf32, #tpu.memory_space<vmem>>) attributes {dimension_semantics = [#tpu.dimension_semantics<parallel>], iteration_bounds = array<i64: 2>, scalar_prefetch = 0 : i64, scratch_operands = 0 : i64, tpu.core_type = #tpu.core_type<tc>, window_params = [{transform_indices = @transform_0, window_bounds = array<i64: 1, 8, 32>}, {transform_indices = @transform_1, window_bounds = array<i64: 1, 8, 32>}, {transform_indices = @transform_2, window_bounds = array<i64: 1, 1, 1>}, {transform_indices = @transform_3, window_bounds = array<i64: 1, 1, 1>}, {pipeline_mode = #tpu.pipeline_mode<synchronous>, transform_indices = @transform_4, window_bounds = array<i64: 96, 32>}, {pipeline_mode = #tpu.pipeline_mode<synchronous>, transform_indices = @transform_5, window_bounds = array<i64: 1, 96>}, {pipeline_mode = #tpu.pipeline_mode<synchronous>, transform_indices = @transform_6, window_bounds = array<i64: 9, 224>}, {pipeline_mode = #tpu.pipeline_mode<synchronous>, transform_indices = @transform_7, window_bounds = array<i64: 1, 9>}, {transform_indices = @transform_8, window_bounds = array<i64: 1, 8, 9>}, {transform_indices = @transform_9, window_bounds = array<i64: 1, 8, 9>}]} {
    %c0 = arith.constant 0 : index
    %c0_0 = arith.constant 0 : index
    %c0_1 = arith.constant 0 : index
    %0 = vector.load %arg1[%c0, %c0_0, %c0_1] : memref<1x8x32xf32, #tpu.memory_space<vmem>>, vector<1x8x32xf32>
    %c0_2 = arith.constant 0 : index
    %c0_3 = arith.constant 0 : index
    %c0_4 = arith.constant 0 : index
    %1 = vector.load %arg2[%c0_2, %c0_3, %c0_4] : memref<1x8x32xf32, #tpu.memory_space<vmem>>, vector<1x8x32xf32>
    %c0_5 = arith.constant 0 : index
    %c0_6 = arith.constant 0 : index
    %c0_7 = arith.constant 0 : index
    %2 = vector.load %arg3[%c0_5, %c0_6, %c0_7] : memref<1x1x1xi32, #tpu.memory_space<vmem>>, vector<1x1x1xi32>
    %c0_8 = arith.constant 0 : index
    %c0_9 = arith.constant 0 : index
    %c0_10 = arith.constant 0 : index
    %3 = vector.load %arg4[%c0_8, %c0_9, %c0_10] : memref<1x1x1xi32, #tpu.memory_space<vmem>>, vector<1x1x1xi32>
    %4 = tpu.iota {dimensions = array<i32: 1>} : vector<1x8x8xi32>
    %5 = vector.broadcast %2 : vector<1x1x1xi32> to vector<1x8x8xi32>
    %6 = arith.cmpi slt, %4, %5 : vector<1x8x8xi32>
    %7 = tpu.iota {dimensions = array<i32: 2>} : vector<1x8x8xi32>
    %8 = vector.broadcast %3 : vector<1x1x1xi32> to vector<1x8x8xi32>
    %9 = arith.cmpi slt, %7, %8 : vector<1x8x8xi32>
    %10 = tpu.iota {dimensions = array<i32: 2>} : vector<1x8x8xi32>
    %11 = vector.broadcast %2 : vector<1x1x1xi32> to vector<1x8x8xi32>
    %12 = arith.cmpi slt, %10, %11 : vector<1x8x8xi32>
    %13 = tpu.iota {dimensions = array<i32: 1>} : vector<1x8x8xi32>
    %14 = vector.broadcast %3 : vector<1x1x1xi32> to vector<1x8x8xi32>
    %15 = arith.cmpi slt, %13, %14 : vector<1x8x8xi32>
    %c0_11 = arith.constant 0 : index
    %c0_12 = arith.constant 0 : index
    %16 = vector.load %arg5[%c0_11, %c0_12] : memref<96x32xf32, #tpu.memory_space<vmem>>, vector<96x32xf32>
    "tpu.trace_start"() <{level = 10 : i32, message = "bld,ed->ble"}> : () -> ()
    %cst = arith.constant dense<0.000000e+00> : vector<1x8x96xf32>
    %17 = tpu.matmul %0, %16, %cst {dimension_numbers = #tpu.dot_dimension_numbers<[2], [1], [0, 1], [0], [0, 0, 0, 1, 1, 0], [], []>} : vector<1x8x32xf32>, vector<96x32xf32>, vector<1x8x96xf32> -> vector<1x8x96xf32>
    "tpu.trace_stop"() : () -> ()
    %c0_13 = arith.constant 0 : index
    %c0_14 = arith.constant 0 : index
    %18 = vector.load %arg6[%c0_13, %c0_14] : memref<1x96xf32, #tpu.memory_space<vmem>>, vector<1x96xf32>
    %19 = vector.shape_cast %18 : vector<1x96xf32> to vector<1x1x96xf32>
    %20 = vector.broadcast %19 : vector<1x1x96xf32> to vector<1x8x96xf32>
    %21 = arith.addf %17, %20 : vector<1x8x96xf32>
    %22 = vector.extract_strided_slice %21 {offsets = [0, 0, 0], sizes = [1, 8, 32], strides = [1, 1, 1]} : vector<1x8x96xf32> to vector<1x8x32xf32>
    "tpu.trace_start"() <{level = 10 : i32, message = "bqd,bkd->bqk"}> : () -> ()
    %cst_15 = arith.constant dense<0.000000e+00> : vector<1x8x8xf32>
    %23 = tpu.matmul %22, %1, %cst_15 {dimension_numbers = #tpu.dot_dimension_numbers<[2], [2], [1], [1], [0, 0, 0, 1, 1, 1], [0], [0]>} : vector<1x8x32xf32>, vector<1x8x32xf32>, vector<1x8x8xf32> -> vector<1x8x8xf32>
    "tpu.trace_stop"() : () -> ()
    %24 = tpu.transpose %23, [0, 2, 1] : vector<1x8x8xf32> -> vector<1x8x8xf32>
    %cst_16 = arith.constant 0xFF800000 : f32
    %25 = vector.broadcast %cst_16 : f32 to vector<1x8x8xf32>
    %26 = arith.select %6, %23, %25 : vector<1x8x8xi1>, vector<1x8x8xf32>
    %cst_17 = arith.constant 0xFF800000 : f32
    %27 = vector.broadcast %cst_17 : f32 to vector<1x8x8xf32>
    %28 = arith.select %15, %24, %27 : vector<1x8x8xi1>, vector<1x8x8xf32>
    %cst_18 = arith.constant dense<0xFF800000> : vector<1x8xf32>
    %29 = vector.multi_reduction <maximumf>, %26, %cst_18 [2] : vector<1x8x8xf32> to vector<1x8xf32>
    %30 = vector.shape_cast %29 : vector<1x8xf32> to vector<1x8x1xf32>
    %cst_19 = arith.constant dense<0xFF800000> : vector<1x1xf32>
    %31 = vector.multi_reduction <maximumf>, %30, %cst_19 [1] : vector<1x8x1xf32> to vector<1x1xf32>
    %32 = vector.shape_cast %31 : vector<1x1xf32> to vector<1x1x1xf32>
    %33 = vector.broadcast %32 : vector<1x1x1xf32> to vector<1x8x1xf32>
    %34 = arith.subf %30, %33 : vector<1x8x1xf32>
    %35 = math.exp %34 : vector<1x8x1xf32>
    %cst_20 = arith.constant dense<0.000000e+00> : vector<1x1xf32>
    %36 = vector.multi_reduction <add>, %35, %cst_20 [1] : vector<1x8x1xf32> to vector<1x1xf32>
    %37 = vector.shape_cast %36 : vector<1x1xf32> to vector<1x1x1xf32>
    %38 = vector.broadcast %37 : vector<1x1x1xf32> to vector<1x8x1xf32>
    %39 = arith.divf %35, %38 : vector<1x8x1xf32>
    %cst_21 = arith.constant dense<0xFF800000> : vector<1x8xf32>
    %40 = vector.multi_reduction <maximumf>, %28, %cst_21 [2] : vector<1x8x8xf32> to vector<1x8xf32>
    %41 = vector.shape_cast %40 : vector<1x8xf32> to vector<1x8x1xf32>
    %cst_22 = arith.constant dense<0xFF800000> : vector<1x1xf32>
    %42 = vector.multi_reduction <maximumf>, %41, %cst_22 [1] : vector<1x8x1xf32> to vector<1x1xf32>
    %43 = vector.shape_cast %42 : vector<1x1xf32> to vector<1x1x1xf32>
    %44 = vector.broadcast %43 : vector<1x1x1xf32> to vector<1x8x1xf32>
    %45 = arith.subf %41, %44 : vector<1x8x1xf32>
    %46 = math.exp %45 : vector<1x8x1xf32>
    %cst_23 = arith.constant dense<0.000000e+00> : vector<1x1xf32>
    %47 = vector.multi_reduction <add>, %46, %cst_23 [1] : vector<1x8x1xf32> to vector<1x1xf32>
    %48 = vector.shape_cast %47 : vector<1x1xf32> to vector<1x1x1xf32>
    %49 = vector.broadcast %48 : vector<1x1x1xf32> to vector<1x8x1xf32>
    %50 = arith.divf %46, %49 : vector<1x8x1xf32>
    %51 = vector.broadcast %39 : vector<1x8x1xf32> to vector<1x8x32xf32>
    %52 = arith.mulf %51, %0 : vector<1x8x32xf32>
    %53 = vector.broadcast %50 : vector<1x8x1xf32> to vector<1x8x32xf32>
    %54 = arith.mulf %53, %1 : vector<1x8x32xf32>
    %55 = vector.extract_strided_slice %21 {offsets = [0, 0, 32], sizes = [1, 8, 32], strides = [1, 1, 1]} : vector<1x8x96xf32> to vector<1x8x32xf32>
    "tpu.trace_start"() <{level = 10 : i32, message = "bqd,bkd->bqk"}> : () -> ()
    %cst_24 = arith.constant dense<0.000000e+00> : vector<1x8x8xf32>
    %56 = tpu.matmul %55, %1, %cst_24 {dimension_numbers = #tpu.dot_dimension_numbers<[2], [2], [1], [1], [0, 0, 0, 1, 1, 1], [0], [0]>} : vector<1x8x32xf32>, vector<1x8x32xf32>, vector<1x8x8xf32> -> vector<1x8x8xf32>
    "tpu.trace_stop"() : () -> ()
    %57 = tpu.transpose %56, [0, 2, 1] : vector<1x8x8xf32> -> vector<1x8x8xf32>
    %cst_25 = arith.constant 0xFF800000 : f32
    %58 = vector.broadcast %cst_25 : f32 to vector<1x8x8xf32>
    %59 = arith.select %6, %56, %58 : vector<1x8x8xi1>, vector<1x8x8xf32>
    %cst_26 = arith.constant 0xFF800000 : f32
    %60 = vector.broadcast %cst_26 : f32 to vector<1x8x8xf32>
    %61 = arith.select %15, %57, %60 : vector<1x8x8xi1>, vector<1x8x8xf32>
    %cst_27 = arith.constant dense<0.000000e+00> : vector<1x8xf32>
    %62 = vector.multi_reduction <add>, %59, %cst_27 [2] : vector<1x8x8xf32> to vector<1x8xf32>
    %63 = vector.shape_cast %62 : vector<1x8xf32> to vector<1x8x1xf32>
    %cst_28 = arith.constant 8.000000e+00 : f32
    %64 = vector.broadcast %cst_28 : f32 to vector<1x8x1xf32>
    %65 = arith.divf %63, %64 : vector<1x8x1xf32>
    %cst_29 = arith.constant dense<0xFF800000> : vector<1x1xf32>
    %66 = vector.multi_reduction <maximumf>, %65, %cst_29 [1] : vector<1x8x1xf32> to vector<1x1xf32>
    %67 = vector.shape_cast %66 : vector<1x1xf32> to vector<1x1x1xf32>
    %68 = vector.broadcast %67 : vector<1x1x1xf32> to vector<1x8x1xf32>
    %69 = arith.subf %65, %68 : vector<1x8x1xf32>
    %70 = math.exp %69 : vector<1x8x1xf32>
    %cst_30 = arith.constant dense<0.000000e+00> : vector<1x1xf32>
    %71 = vector.multi_reduction <add>, %70, %cst_30 [1] : vector<1x8x1xf32> to vector<1x1xf32>
    %72 = vector.shape_cast %71 : vector<1x1xf32> to vector<1x1x1xf32>
    %73 = vector.broadcast %72 : vector<1x1x1xf32> to vector<1x8x1xf32>
    %74 = arith.divf %70, %73 : vector<1x8x1xf32>
    %cst_31 = arith.constant dense<0.000000e+00> : vector<1x8xf32>
    %75 = vector.multi_reduction <add>, %61, %cst_31 [2] : vector<1x8x8xf32> to vector<1x8xf32>
    %76 = vector.shape_cast %75 : vector<1x8xf32> to vector<1x8x1xf32>
    %cst_32 = arith.constant 8.000000e+00 : f32
    %77 = vector.broadcast %cst_32 : f32 to vector<1x8x1xf32>
    %78 = arith.divf %76, %77 : vector<1x8x1xf32>
    %cst_33 = arith.constant dense<0xFF800000> : vector<1x1xf32>
    %79 = vector.multi_reduction <maximumf>, %78, %cst_33 [1] : vector<1x8x1xf32> to vector<1x1xf32>
    %80 = vector.shape_cast %79 : vector<1x1xf32> to vector<1x1x1xf32>
    %81 = vector.broadcast %80 : vector<1x1x1xf32> to vector<1x8x1xf32>
    %82 = arith.subf %78, %81 : vector<1x8x1xf32>
    %83 = math.exp %82 : vector<1x8x1xf32>
    %cst_34 = arith.constant dense<0.000000e+00> : vector<1x1xf32>
    %84 = vector.multi_reduction <add>, %83, %cst_34 [1] : vector<1x8x1xf32> to vector<1x1xf32>
    %85 = vector.shape_cast %84 : vector<1x1xf32> to vector<1x1x1xf32>
    %86 = vector.broadcast %85 : vector<1x1x1xf32> to vector<1x8x1xf32>
    %87 = arith.divf %83, %86 : vector<1x8x1xf32>
    %88 = vector.broadcast %74 : vector<1x8x1xf32> to vector<1x8x32xf32>
    %89 = arith.mulf %88, %0 : vector<1x8x32xf32>
    %90 = vector.broadcast %87 : vector<1x8x1xf32> to vector<1x8x32xf32>
    %91 = arith.mulf %90, %1 : vector<1x8x32xf32>
    %92 = vector.extract_strided_slice %21 {offsets = [0, 0, 64], sizes = [1, 8, 32], strides = [1, 1, 1]} : vector<1x8x96xf32> to vector<1x8x32xf32>
    "tpu.trace_start"() <{level = 10 : i32, message = "bqd,bkd->bqk"}> : () -> ()
    %cst_35 = arith.constant dense<0.000000e+00> : vector<1x8x8xf32>
    %93 = tpu.matmul %92, %1, %cst_35 {dimension_numbers = #tpu.dot_dimension_numbers<[2], [2], [1], [1], [0, 0, 0, 1, 1, 1], [0], [0]>} : vector<1x8x32xf32>, vector<1x8x32xf32>, vector<1x8x8xf32> -> vector<1x8x8xf32>
    "tpu.trace_stop"() : () -> ()
    %94 = tpu.transpose %93, [0, 2, 1] : vector<1x8x8xf32> -> vector<1x8x8xf32>
    %cst_36 = arith.constant 0xFF800000 : f32
    %95 = vector.broadcast %cst_36 : f32 to vector<1x8x8xf32>
    %96 = arith.select %9, %93, %95 : vector<1x8x8xi1>, vector<1x8x8xf32>
    %cst_37 = arith.constant 0xFF800000 : f32
    %97 = vector.broadcast %cst_37 : f32 to vector<1x8x8xf32>
    %98 = arith.select %12, %94, %97 : vector<1x8x8xi1>, vector<1x8x8xf32>
    %cst_38 = arith.constant dense<0xFF800000> : vector<1x8xf32>
    %99 = vector.multi_reduction <maximumf>, %96, %cst_38 [2] : vector<1x8x8xf32> to vector<1x8xf32>
    %100 = vector.shape_cast %99 : vector<1x8xf32> to vector<1x8x1xf32>
    %101 = vector.broadcast %100 : vector<1x8x1xf32> to vector<1x8x8xf32>
    %102 = arith.subf %96, %101 : vector<1x8x8xf32>
    %103 = math.exp %102 : vector<1x8x8xf32>
    %cst_39 = arith.constant dense<0.000000e+00> : vector<1x8xf32>
    %104 = vector.multi_reduction <add>, %103, %cst_39 [2] : vector<1x8x8xf32> to vector<1x8xf32>
    %105 = vector.shape_cast %104 : vector<1x8xf32> to vector<1x8x1xf32>
    %106 = vector.broadcast %105 : vector<1x8x1xf32> to vector<1x8x8xf32>
    %107 = arith.divf %103, %106 : vector<1x8x8xf32>
    "tpu.trace_start"() <{level = 10 : i32, message = "bqk,bkd->bqd"}> : () -> ()
    %cst_40 = arith.constant dense<0.000000e+00> : vector<1x8x32xf32>
    %108 = tpu.matmul %107, %1, %cst_40 {dimension_numbers = #tpu.dot_dimension_numbers<[2], [1], [1], [2], [0, 0, 0, 1, 1, 2], [0], [0]>} : vector<1x8x8xf32>, vector<1x8x32xf32>, vector<1x8x32xf32> -> vector<1x8x32xf32>
    "tpu.trace_stop"() : () -> ()
    %cst_41 = arith.constant dense<0xFF800000> : vector<1x8xf32>
    %109 = vector.multi_reduction <maximumf>, %98, %cst_41 [2] : vector<1x8x8xf32> to vector<1x8xf32>
    %110 = vector.shape_cast %109 : vector<1x8xf32> to vector<1x8x1xf32>
    %111 = vector.broadcast %110 : vector<1x8x1xf32> to vector<1x8x8xf32>
    %112 = arith.subf %98, %111 : vector<1x8x8xf32>
    %113 = math.exp %112 : vector<1x8x8xf32>
    %cst_42 = arith.constant dense<0.000000e+00> : vector<1x8xf32>
    %114 = vector.multi_reduction <add>, %113, %cst_42 [2] : vector<1x8x8xf32> to vector<1x8xf32>
    %115 = vector.shape_cast %114 : vector<1x8xf32> to vector<1x8x1xf32>
    %116 = vector.broadcast %115 : vector<1x8x1xf32> to vector<1x8x8xf32>
    %117 = arith.divf %113, %116 : vector<1x8x8xf32>
    "tpu.trace_start"() <{level = 10 : i32, message = "bkq,bqd->bkd"}> : () -> ()
    %cst_43 = arith.constant dense<0.000000e+00> : vector<1x8x32xf32>
    %118 = tpu.matmul %117, %0, %cst_43 {dimension_numbers = #tpu.dot_dimension_numbers<[2], [1], [1], [2], [0, 0, 0, 1, 1, 2], [0], [0]>} : vector<1x8x8xf32>, vector<1x8x32xf32>, vector<1x8x32xf32> -> vector<1x8x32xf32>
    "tpu.trace_stop"() : () -> ()
    %c0_44 = arith.constant 0 : index
    %c0_45 = arith.constant 0 : index
    %119 = vector.load %arg7[%c0_44, %c0_45] : memref<9x224xf32, #tpu.memory_space<vmem>>, vector<9x224xf32>
    %c0_46 = arith.constant 0 : index
    %c0_47 = arith.constant 0 : index
    %120 = vector.load %arg8[%c0_46, %c0_47] : memref<1x9xf32, #tpu.memory_space<vmem>>, vector<1x9xf32>
    %121 = arith.mulf %52, %0 : vector<1x8x32xf32>
    %122 = arith.mulf %89, %0 : vector<1x8x32xf32>
    %123 = arith.mulf %108, %0 : vector<1x8x32xf32>
    %124 = tpu.concatenate %52, %89, %108, %0, %121, %122, %123 in 2 : vector<1x8x32xf32>, vector<1x8x32xf32>, vector<1x8x32xf32>, vector<1x8x32xf32>, vector<1x8x32xf32>, vector<1x8x32xf32>, vector<1x8x32xf32> -> vector<1x8x224xf32>
    "tpu.trace_start"() <{level = 10 : i32, message = "bld,od->blo"}> : () -> ()
    %cst_48 = arith.constant dense<0.000000e+00> : vector<1x8x9xf32>
    %125 = tpu.matmul %124, %119, %cst_48 {dimension_numbers = #tpu.dot_dimension_numbers<[2], [1], [0, 1], [0], [0, 0, 0, 1, 1, 0], [], []>} : vector<1x8x224xf32>, vector<9x224xf32>, vector<1x8x9xf32> -> vector<1x8x9xf32>
    "tpu.trace_stop"() : () -> ()
    %126 = vector.shape_cast %120 : vector<1x9xf32> to vector<1x1x9xf32>
    %127 = vector.broadcast %126 : vector<1x1x9xf32> to vector<1x8x9xf32>
    %128 = arith.addf %125, %127 : vector<1x8x9xf32>
    %cst_49 = arith.constant 0.000000e+00 : f32
    %129 = vector.broadcast %cst_49 : f32 to vector<1x8x9xf32>
    %130 = arith.maximumf %128, %129 : vector<1x8x9xf32>
    %c0_50 = arith.constant 0 : index
    %c0_51 = arith.constant 0 : index
    %c0_52 = arith.constant 0 : index
    %131 = vector.load %arg9[%c0_50, %c0_51, %c0_52] : memref<1x8x9xf32, #tpu.memory_space<vmem>>, vector<1x8x9xf32>
    tpu.vector_store %arg9[%c0_50, %c0_51, %c0_52], %130 {strides = array<i32>} : memref<1x8x9xf32, #tpu.memory_space<vmem>>, vector<1x8x9xf32>,
    %132 = arith.mulf %54, %1 : vector<1x8x32xf32>
    %133 = arith.mulf %91, %1 : vector<1x8x32xf32>
    %134 = arith.mulf %118, %1 : vector<1x8x32xf32>
    %135 = tpu.concatenate %54, %91, %118, %1, %132, %133, %134 in 2 : vector<1x8x32xf32>, vector<1x8x32xf32>, vector<1x8x32xf32>, vector<1x8x32xf32>, vector<1x8x32xf32>, vector<1x8x32xf32>, vector<1x8x32xf32> -> vector<1x8x224xf32>
    "tpu.trace_start"() <{level = 10 : i32, message = "bld,od->blo"}> : () -> ()
    %cst_53 = arith.constant dense<0.000000e+00> : vector<1x8x9xf32>
    %136 = tpu.matmul %135, %119, %cst_53 {dimension_numbers = #tpu.dot_dimension_numbers<[2], [1], [0, 1], [0], [0, 0, 0, 1, 1, 0], [], []>} : vector<1x8x224xf32>, vector<9x224xf32>, vector<1x8x9xf32> -> vector<1x8x9xf32>
    "tpu.trace_stop"() : () -> ()
    %137 = vector.shape_cast %120 : vector<1x9xf32> to vector<1x1x9xf32>
    %138 = vector.broadcast %137 : vector<1x1x9xf32> to vector<1x8x9xf32>
    %139 = arith.addf %136, %138 : vector<1x8x9xf32>
    %cst_54 = arith.constant 0.000000e+00 : f32
    %140 = vector.broadcast %cst_54 : f32 to vector<1x8x9xf32>
    %141 = arith.maximumf %139, %140 : vector<1x8x9xf32>
    %c0_55 = arith.constant 0 : index
    %c0_56 = arith.constant 0 : index
    %c0_57 = arith.constant 0 : index
    %142 = vector.load %arg10[%c0_55, %c0_56, %c0_57] : memref<1x8x9xf32, #tpu.memory_space<vmem>>, vector<1x8x9xf32>
    tpu.vector_store %arg10[%c0_55, %c0_56, %c0_57], %141 {strides = array<i32>} : memref<1x8x9xf32, #tpu.memory_space<vmem>>, vector<1x8x9xf32>,
    return
  }
  func.func @transform_0(%arg0: i32) -> (i32, i32, i32) {
    %c0_i32 = arith.constant 0 : i32
    %c0_i32_0 = arith.constant 0 : i32
    %c0_i32_1 = arith.constant 0 : i32
    return %arg0, %c0_i32, %c0_i32_0 : i32, i32, i32
  }
  func.func @transform_1(%arg0: i32) -> (i32, i32, i32) {
    %c0_i32 = arith.constant 0 : i32
    %c0_i32_0 = arith.constant 0 : i32
    %c0_i32_1 = arith.constant 0 : i32
    return %arg0, %c0_i32, %c0_i32_0 : i32, i32, i32
  }
  func.func @transform_2(%arg0: i32) -> (i32, i32, i32) {
    %c0_i32 = arith.constant 0 : i32
    %c0_i32_0 = arith.constant 0 : i32
    %c0_i32_1 = arith.constant 0 : i32
    return %arg0, %c0_i32, %c0_i32_0 : i32, i32, i32
  }
  func.func @transform_3(%arg0: i32) -> (i32, i32, i32) {
    %c0_i32 = arith.constant 0 : i32
    %c0_i32_0 = arith.constant 0 : i32
    %c0_i32_1 = arith.constant 0 : i32
    return %arg0, %c0_i32, %c0_i32_0 : i32, i32, i32
  }
  func.func @transform_4(%arg0: i32) -> (i32, i32) {
    %c0_i32 = arith.constant 0 : i32
    %c0_i32_0 = arith.constant 0 : i32
    %c0_i32_1 = arith.constant 0 : i32
    return %c0_i32, %c0_i32_0 : i32, i32
  }
  func.func @transform_5(%arg0: i32) -> (i32, i32) {
    %c0_i32 = arith.constant 0 : i32
    %c0_i32_0 = arith.constant 0 : i32
    %c0_i32_1 = arith.constant 0 : i32
    return %c0_i32, %c0_i32_0 : i32, i32
  }
  func.func @transform_6(%arg0: i32) -> (i32, i32) {
    %c0_i32 = arith.constant 0 : i32
    %c0_i32_0 = arith.constant 0 : i32
    %c0_i32_1 = arith.constant 0 : i32
    return %c0_i32, %c0_i32_0 : i32, i32
  }
  func.func @transform_7(%arg0: i32) -> (i32, i32) {
    %c0_i32 = arith.constant 0 : i32
    %c0_i32_0 = arith.constant 0 : i32
    %c0_i32_1 = arith.constant 0 : i32
    return %c0_i32, %c0_i32_0 : i32, i32
  }
  func.func @transform_8(%arg0: i32) -> (i32, i32, i32) {
    %c0_i32 = arith.constant 0 : i32
    %c0_i32_0 = arith.constant 0 : i32
    %c0_i32_1 = arith.constant 0 : i32
    return %arg0, %c0_i32, %c0_i32_0 : i32, i32, i32
  }
  func.func @transform_9(%arg0: i32) -> (i32, i32, i32) {
    %c0_i32 = arith.constant 0 : i32
    %c0_i32_0 = arith.constant 0 : i32
    %c0_i32_1 = arith.constant 0 : i32
    return %arg0, %c0_i32, %c0_i32_0 : i32, i32, i32
  }
}

</mosaic_0001>

<llo_original>
// kernel: tpu_custom_call.1
$region0: #{tpu_custom_call.1}
  #allocation0 [shape = 'u32[]', space=smem, size = 0x4, offset = 0x4, fixed_abs, tag = 'smem constant byte address 0x4 - core index']
  #allocation1 [shape = 'u32[144,128]{1,0:T(1,128)}', space=vmem, size = 0x12000, scoped, tag = 'internal scratch']
  %s0 = inlined_call_operand.hbm [shape: f32[2,8,32], index: 0, kind: input, shape index: {}]
  %s1 = inlined_call_operand.hbm [shape: f32[2,8,32], index: 1, kind: input, shape index: {}]
  %s2 = inlined_call_operand.hbm [shape: s32[2,1,1], index: 2, kind: input, shape index: {}]
  %s3 = inlined_call_operand.hbm [shape: s32[2,1,1], index: 3, kind: input, shape index: {}]
  %s4 = inlined_call_operand.hbm [shape: f32[96,32], index: 4, kind: input, shape index: {}]
  %s5 = inlined_call_operand.hbm [shape: f32[1,96], index: 5, kind: input, shape index: {}]
  %s6 = inlined_call_operand.hbm [shape: f32[9,224], index: 6, kind: input, shape index: {}]
  %s7 = inlined_call_operand.hbm [shape: f32[1,9], index: 7, kind: input, shape index: {}]
  %s8 = inlined_call_operand.hbm [shape: f32[2,8,9], index: 8, kind: output, shape index: {0}]
  %s9 = inlined_call_operand.hbm [shape: f32[2,8,9], index: 9, kind: output, shape index: {1}]
  %10 = xla_tuple %s8, %s9
  %s11 = sld [smem:[#allocation0]]
  $region105: #{tpu_custom_call.1} parent=0
    _
  %s13 = ssub.s32 1, %s11
  %s14 = scalar_select 0, %s13, %s11
  $region1: #{tpu_custom_call.1} parent=0
    #allocation2 [shape = 'u8[8192]{0}', space=vmem, size = 0x2000, scoped, tag = 'input window, operand 0']
    #allocation3 [shape = 's32[2]{0}', space=sflag, size = 0x8, scoped, tag = 'scoped memory for tpu_custom_call.1']
    #allocation4 [shape = 's32[2]{0}', space=sflag, size = 0x8, scoped, tag = 'scoped memory for tpu_custom_call.1']
    #allocation5 [shape = 'u8[8192]{0}', space=vmem, size = 0x2000, scoped, tag = 'input window, operand 1']
    #allocation6 [shape = 's32[2]{0}', space=sflag, size = 0x8, scoped, tag = 'scoped memory for tpu_custom_call.1']
    #allocation7 [shape = 'u8[1024]{0}', space=vmem, size = 0x400, scoped, tag = 'input window, operand 2']
    #allocation8 [shape = 'u8[1024]{0}', space=vmem, size = 0x400, scoped, tag = 'input window, operand 3']
    #allocation9 [shape = 's32[2]{0}', space=sflag, size = 0x8, scoped, tag = 'scoped memory for tpu_custom_call.1']
    #allocation10 [shape = 'u8[49152]{0}', space=vmem, size = 0xc000, scoped, tag = 'input window, operand 4, single buffered']
    #allocation11 [shape = 'u8[512]{0}', space=vmem, size = 0x400, scoped, tag = 'input window, operand 5, single buffered']
    #allocation12 [shape = 's32[1]{0}', space=sflag, size = 0x4, scoped, tag = 'scoped memory for tpu_custom_call.1']
    #allocation13 [shape = 'u8[16384]{0}', space=vmem, size = 0x4000, scoped, tag = 'input window, operand 6, single buffered']
    #allocation14 [shape = 'u8[512]{0}', space=vmem, size = 0x400, scoped, tag = 'input window, operand 7, single buffered']
    #allocation15 [shape = 's32[1]{0}', space=sflag, size = 0x4, scoped, tag = 'scoped memory for tpu_custom_call.1']
    #allocation16 [shape = 'u8[8192]{0}', space=vmem, size = 0x2000, scoped, tag = 'output window, operand 0']
    #allocation17 [shape = 'u8[8192]{0}', space=vmem, size = 0x2000, scoped, tag = 'output window, operand 1']
    #allocation18 [shape = 's32[2]{0}', space=sflag, size = 0x8, scoped, tag = 'scoped memory for tpu_custom_call.1']
    %15 = vsyncpa [#allocation3], 0
    %s16 = scalar_lea.sflag [#allocation3], 1
    %17 = vsyncpa %s16, 0
    %18 = vsyncpa [#allocation6], 0
    %s19 = scalar_lea.sflag [#allocation6], 1
    %20 = vsyncpa %s19, 0
    %21 = vsyncpa [#allocation9], 0
    %s22 = scalar_lea.sflag [#allocation9], 1
    %23 = vsyncpa %s22, 0
    %24 = vsyncpa [#allocation12], 0
    %25 = vsyncpa [#allocation15], 0
    %26 = vsyncpa [#allocation4], 0
    %s27 = scalar_lea.sflag [#allocation4], 1
    %28 = vsyncpa %s27, 0
    %29 = vsyncpa [#allocation18], 0
    %s30 = scalar_lea.sflag [#allocation18], 1
    %31 = vsyncpa %s30, 0
    loop: start=0, step=1, limit=4
    $region2: #{tpu_custom_call.1} parent=1 // loop_pre_header
      _
    $region3: #{tpu_custom_call.1} parent=1 // loop_header
      %s33 = sphi 0, %s37
      %p34 = scmp.ge.s32.totalorder %s33, 4
      %s43 = sphi 0, %s45
      %s46 = sphi 0, %s43
      %s47 = sphi 0, %s46
      %s63 = sphi 0, %s47
      %s69 = sphi 0, %s71
      %s72 = sphi 0, %s69
      %s73 = sphi 0, %s72
      %s89 = sphi 0, %s73
      %s95 = sphi 0, %s97
      %s98 = sphi 0, %s95
      %s99 = sphi 0, %s98
      %s115 = sphi 0, %s99
      %s121 = sphi 0, %s123
      %s124 = sphi 0, %s121
      %s125 = sphi 0, %s124
      %s141 = sphi 0, %s125
      %s145 = sphi 0, %s145
      %s147 = sphi 0, %s145
      %s148 = sphi 0, %s147
      %s162 = sphi 0, %s148
      %s166 = sphi 0, %s166
      %s168 = sphi 0, %s166
      %s169 = sphi 0, %s168
      %s183 = sphi 0, %s169
      %s187 = sphi 0, %s187
      %s189 = sphi 0, %s187
      %s190 = sphi 0, %s189
      %s204 = sphi 0, %s190
      %s208 = sphi 0, %s208
      %s210 = sphi 0, %s208
      %s211 = sphi 0, %s210
      %s225 = sphi 0, %s211
      %s231 = sphi 0, %s233
      %s234 = sphi 0, %s231
      %s235 = sphi 0, %s234
      %s251 = sphi 0, %s235
      %s257 = sphi 0, %s259
      %s260 = sphi 0, %s257
      %s261 = sphi 0, %s260
      %s277 = sphi 0, %s261
    $region4: #{tpu_custom_call.1} parent=1 // loop_header_branch
      %36 = sbr.rel (%p34) target = $region8
    $region5: #{tpu_custom_call.1} parent=1 // loop_body
      %s38 = ssub.s32 %s33, 1
      %s39 = ssub.s32 %s33, 2
      %s40 = sadd.s32 %s33, 1
      %s41 = ssub.s32 %s33, %s40
      %p42 = scmp.eq.s32.totalorder %s41, 0
      %s44 = sadd.s32 %s43, 1
      %s45 = scalar_select %p42, %s43, %s44
      %p48 = pneg %p42
      %p49 = scmp.eq.s32.totalorder %s33, 1
      %p50 = por %p48, %p49
      %p51 = scmp.ne.s32.totalorder %s43, %s46
      %p52 = scmp.eq.s32.totalorder %s33, 0
      %p53 = por %p51, %p52
      %p54 = scmp.ne.s32.totalorder %s43, %s46
      %p55 = scmp.eq.s32.totalorder %s38, 1
      %p56 = por %p54, %p55
      %p57 = scmp.ne.s32.totalorder %s46, %s47
      %p58 = scmp.eq.s32.totalorder %s38, 0
      %p59 = por %p57, %p58
      %p60 = scmp.ne.s32.totalorder %s46, %s47
      %p61 = scmp.eq.s32.totalorder %s39, 1
      %p62 = por %p60, %p61
      %p64 = scmp.ne.s32.totalorder %s47, %s63
      %p65 = scmp.eq.s32.totalorder %s39, 0
      %p66 = por %p64, %p65
      %s67 = ssub.s32 %s33, %s40
      %p68 = scmp.eq.s32.totalorder %s67, 0
      %s70 = sadd.s32 %s69, 1
      %s71 = scalar_select %p68, %s69, %s70
      %p74 = pneg %p68
      %p75 = scmp.eq.s32.totalorder %s33, 1
      %p76 = por %p74, %p75
      %p77 = scmp.ne.s32.totalorder %s69, %s72
      %p78 = scmp.eq.s32.totalorder %s33, 0
      %p79 = por %p77, %p78
      %p80 = scmp.ne.s32.totalorder %s69, %s72
      %p81 = scmp.eq.s32.totalorder %s38, 1
      %p82 = por %p80, %p81
      %p83 = scmp.ne.s32.totalorder %s72, %s73
      %p84 = scmp.eq.s32.totalorder %s38, 0
      %p85 = por %p83, %p84
      %p86 = scmp.ne.s32.totalorder %s72, %s73
      %p87 = scmp.eq.s32.totalorder %s39, 1
      %p88 = por %p86, %p87
      %p90 = scmp.ne.s32.totalorder %s73, %s89
      %p91 = scmp.eq.s32.totalorder %s39, 0
      %p92 = por %p90, %p91
      %s93 = ssub.s32 %s33, %s40
      %p94 = scmp.eq.s32.totalorder %s93, 0
      %s96 = sadd.s32 %s95, 1
      %s97 = scalar_select %p94, %s95, %s96
      %p100 = pneg %p94
      %p101 = scmp.eq.s32.totalorder %s33, 1
      %p102 = por %p100, %p101
      %p103 = scmp.ne.s32.totalorder %s95, %s98
      %p104 = scmp.eq.s32.totalorder %s33, 0
      %p105 = por %p103, %p104
      %p106 = scmp.ne.s32.totalorder %s95, %s98
      %p107 = scmp.eq.s32.totalorder %s38, 1
      %p108 = por %p106, %p107
      %p109 = scmp.ne.s32.totalorder %s98, %s99
      %p110 = scmp.eq.s32.totalorder %s38, 0
      %p111 = por %p109, %p110
      %p112 = scmp.ne.s32.totalorder %s98, %s99
      %p113 = scmp.eq.s32.totalorder %s39, 1
      %p114 = por %p112, %p113
      %p116 = scmp.ne.s32.totalorder %s99, %s115
      %p117 = scmp.eq.s32.totalorder %s39, 0
      %p118 = por %p116, %p117
      %s119 = ssub.s32 %s33, %s40
      %p120 = scmp.eq.s32.totalorder %s119, 0
      %s122 = sadd.s32 %s121, 1
      %s123 = scalar_select %p120, %s121, %s122
      %p126 = pneg %p120
      %p127 = scmp.eq.s32.totalorder %s33, 1
      %p128 = por %p126, %p127
      %p129 = scmp.ne.s32.totalorder %s121, %s124
      %p130 = scmp.eq.s32.totalorder %s33, 0
      %p131 = por %p129, %p130
      %p132 = scmp.ne.s32.totalorder %s121, %s124
      %p133 = scmp.eq.s32.totalorder %s38, 1
      %p134 = por %p132, %p133
      %p135 = scmp.ne.s32.totalorder %s124, %s125
      %p136 = scmp.eq.s32.totalorder %s38, 0
      %p137 = por %p135, %p136
      %p138 = scmp.ne.s32.totalorder %s124, %s125
      %p139 = scmp.eq.s32.totalorder %s39, 1
      %p140 = por %p138, %p139
      %p142 = scmp.ne.s32.totalorder %s125, %s141
      %p143 = scmp.eq.s32.totalorder %s39, 0
      %p144 = por %p142, %p143
      %s146 = sadd.s32 %s145, 1
      %p149 = scmp.eq.s32.totalorder %s33, 1
      %p150 = scmp.ne.s32.totalorder %s145, %s147
      %p151 = scmp.eq.s32.totalorder %s33, 0
      %p152 = por %p150, %p151
      %p153 = scmp.ne.s32.totalorder %s145, %s147
      %p154 = scmp.eq.s32.totalorder %s38, 1
      %p155 = por %p153, %p154
      %p156 = scmp.ne.s32.totalorder %s147, %s148
      %p157 = scmp.eq.s32.totalorder %s38, 0
      %p158 = por %p156, %p157
      %p159 = scmp.ne.s32.totalorder %s147, %s148
      %p160 = scmp.eq.s32.totalorder %s39, 1
      %p161 = por %p159, %p160
      %p163 = scmp.ne.s32.totalorder %s148, %s162
      %p164 = scmp.eq.s32.totalorder %s39, 0
      %p165 = por %p163, %p164
      %s167 = sadd.s32 %s166, 1
      %p170 = scmp.eq.s32.totalorder %s33, 1
      %p171 = scmp.ne.s32.totalorder %s166, %s168
      %p172 = scmp.eq.s32.totalorder %s33, 0
      %p173 = por %p171, %p172
      %p174 = scmp.ne.s32.totalorder %s166, %s168
      %p175 = scmp.eq.s32.totalorder %s38, 1
      %p176 = por %p174, %p175
      %p177 = scmp.ne.s32.totalorder %s168, %s169
      %p178 = scmp.eq.s32.totalorder %s38, 0
      %p179 = por %p177, %p178
      %p180 = scmp.ne.s32.totalorder %s168, %s169
      %p181 = scmp.eq.s32.totalorder %s39, 1
      %p182 = por %p180, %p181
      %p184 = scmp.ne.s32.totalorder %s169, %s183
      %p185 = scmp.eq.s32.totalorder %s39, 0
      %p186 = por %p184, %p185
      %s188 = sadd.s32 %s187, 1
      %p191 = scmp.eq.s32.totalorder %s33, 1
      %p192 = scmp.ne.s32.totalorder %s187, %s189
      %p193 = scmp.eq.s32.totalorder %s33, 0
      %p194 = por %p192, %p193
      %p195 = scmp.ne.s32.totalorder %s187, %s189
      %p196 = scmp.eq.s32.totalorder %s38, 1
      %p197 = por %p195, %p196
      %p198 = scmp.ne.s32.totalorder %s189, %s190
      %p199 = scmp.eq.s32.totalorder %s38, 0
      %p200 = por %p198, %p199
      %p201 = scmp.ne.s32.totalorder %s189, %s190
      %p202 = scmp.eq.s32.totalorder %s39, 1
      %p203 = por %p201, %p202
      %p205 = scmp.ne.s32.totalorder %s190, %s204
      %p206 = scmp.eq.s32.totalorder %s39, 0
      %p207 = por %p205, %p206
      %s209 = sadd.s32 %s208, 1
      %p212 = scmp.eq.s32.totalorder %s33, 1
      %p213 = scmp.ne.s32.totalorder %s208, %s210
      %p214 = scmp.eq.s32.totalorder %s33, 0
      %p215 = por %p213, %p214
      %p216 = scmp.ne.s32.totalorder %s208, %s210
      %p217 = scmp.eq.s32.totalorder %s38, 1
      %p218 = por %p216, %p217
      %p219 = scmp.ne.s32.totalorder %s210, %s211
      %p220 = scmp.eq.s32.totalorder %s38, 0
      %p221 = por %p219, %p220
      %p222 = scmp.ne.s32.totalorder %s210, %s211
      %p223 = scmp.eq.s32.totalorder %s39, 1
      %p224 = por %p222, %p223
      %p226 = scmp.ne.s32.totalorder %s211, %s225
      %p227 = scmp.eq.s32.totalorder %s39, 0
      %p228 = por %p226, %p227
      %s229 = ssub.s32 %s33, %s40
      %p230 = scmp.eq.s32.totalorder %s229, 0
      %s232 = sadd.s32 %s231, 1
      %s233 = scalar_select %p230, %s231, %s232
      %p236 = pneg %p230
      %p237 = scmp.eq.s32.totalorder %s33, 1
      %p238 = por %p236, %p237
      %p239 = scmp.ne.s32.totalorder %s231, %s234
      %p240 = scmp.eq.s32.totalorder %s33, 0
      %p241 = por %p239, %p240
      %p242 = scmp.ne.s32.totalorder %s231, %s234
      %p243 = scmp.eq.s32.totalorder %s38, 1
      %p244 = por %p242, %p243
      %p245 = scmp.ne.s32.totalorder %s234, %s235
      %p246 = scmp.eq.s32.totalorder %s38, 0
      %p247 = por %p245, %p246
      %p248 = scmp.ne.s32.totalorder %s234, %s235
      %p249 = scmp.eq.s32.totalorder %s39, 1
      %p250 = por %p248, %p249
      %p252 = scmp.ne.s32.totalorder %s235, %s251
      %p253 = scmp.eq.s32.totalorder %s39, 0
      %p254 = por %p252, %p253
      %s255 = ssub.s32 %s33, %s40
      %p256 = scmp.eq.s32.totalorder %s255, 0
      %s258 = sadd.s32 %s257, 1
      %s259 = scalar_select %p256, %s257, %s258
      %p262 = pneg %p256
      %p263 = scmp.eq.s32.totalorder %s33, 1
      %p264 = por %p262, %p263
      %p265 = scmp.ne.s32.totalorder %s257, %s260
      %p266 = scmp.eq.s32.totalorder %s33, 0
      %p267 = por %p265, %p266
      %p268 = scmp.ne.s32.totalorder %s257, %s260
      %p269 = scmp.eq.s32.totalorder %s38, 1
      %p270 = por %p268, %p269
      %p271 = scmp.ne.s32.totalorder %s260, %s261
      %p272 = scmp.eq.s32.totalorder %s38, 0
      %p273 = por %p271, %p272
      %p274 = scmp.ne.s32.totalorder %s260, %s261
      %p275 = scmp.eq.s32.totalorder %s39, 1
      %p276 = por %p274, %p275
      %p278 = scmp.ne.s32.totalorder %s261, %s277
      %p279 = scmp.eq.s32.totalorder %s39, 0
      %p280 = por %p278, %p279
      %p281 = scmp.le.s32.totalorder 1, %s33
      %p282 = scmp.lt.s32.totalorder %s33, 3
      %p283 = pnand %p281, %p282
      %p284 = pneg %p283
      // Predicated region
      $region9: #{tpu_custom_call.1} parent=5 // pred_check
        _
      $region10: #{tpu_custom_call.1} parent=5 // pred_check_branch
        %286 = sbr.rel (%p283) target = $region12
      $region11: #{tpu_custom_call.1} parent=5 // pred_region
        %s287 = ssub.s32 %s33, 1
        // Predicated region
        $region13: #{tpu_custom_call.1} parent=11 // pred_check
          %p288 = pneg %p158
        $region14: #{tpu_custom_call.1} parent=11 // pred_check_branch
          %290 = sbr.rel (%p288) target = $region16
        $region15: #{tpu_custom_call.1} parent=11 // pred_region
          %s292 = ssub.s32 1536, 1536
          %293 = vsyncadd [#allocation9], %s292
          %s294 = sshll.u32 [#allocation10], 4
          %s295 = int_to_ptr.vmem [resolvable:$true] %s294
          %300 = dma.hbm_to_vmem [thread:$0]  %s4, 1536, %s295, [#allocation9], 128, 128, 8
        $region16: #{tpu_custom_call.1} parent=11 // pred_fallthru
          _
        // Predicated region
        $region17: #{tpu_custom_call.1} parent=11 // pred_check
          %p301 = pneg %p179
        $region18: #{tpu_custom_call.1} parent=11 // pred_check_branch
          %303 = sbr.rel (%p301) target = $region20
        $region19: #{tpu_custom_call.1} parent=11 // pred_region
          %s305 = ssub.s32 16, 16
          %306 = vsyncadd [#allocation12], %s305
          %s308 = sshll.u32 [#allocation11], 4
          %s309 = int_to_ptr.vmem [resolvable:$true] %s308
          %311 = dma.hbm_to_vmem [thread:$0]  %s5, 16, %s309, [#allocation12]
        $region20: #{tpu_custom_call.1} parent=11 // pred_fallthru
          _
        // Predicated region
        $region21: #{tpu_custom_call.1} parent=11 // pred_check
          %p312 = pneg %p200
        $region22: #{tpu_custom_call.1} parent=11 // pred_check_branch
          %314 = sbr.rel (%p312) target = $region24
        $region23: #{tpu_custom_call.1} parent=11 // pred_region
          %s316 = ssub.s32 512, 512
          %317 = vsyncadd [#allocation12], %s316
          %s318 = sshll.u32 [#allocation13], 4
          %s319 = int_to_ptr.vmem [resolvable:$true] %s318
          %324 = dma.hbm_to_vmem [thread:$0]  %s6, 512, %s319, [#allocation12], 256, 256, 16
        $region24: #{tpu_custom_call.1} parent=11 // pred_fallthru
          _
        // Predicated region
        $region25: #{tpu_custom_call.1} parent=11 // pred_check
          %p325 = pneg %p221
        $region26: #{tpu_custom_call.1} parent=11 // pred_check_branch
          %327 = sbr.rel (%p325) target = $region28
        $region27: #{tpu_custom_call.1} parent=11 // pred_region
          %s329 = ssub.s32 16, 16
          %330 = vsyncadd [#allocation15], %s329
          %s332 = sshll.u32 [#allocation14], 4
          %s333 = int_to_ptr.vmem [resolvable:$true] %s332
          %335 = dma.hbm_to_vmem [thread:$0]  %s7, 16, %s333, [#allocation15]
        $region28: #{tpu_custom_call.1} parent=11 // pred_fallthru
          _
      $region12: #{tpu_custom_call.1} parent=5 // pred_fallthru
        _
      %p336 = scmp.lt.s32.totalorder %s33, 2
      // Predicated region
      $region29: #{tpu_custom_call.1} parent=5 // pred_check
        %p337 = pneg %p336
      $region30: #{tpu_custom_call.1} parent=5 // pred_check_branch
        %339 = sbr.rel (%p337) target = $region32
      $region31: #{tpu_custom_call.1} parent=5 // pred_region
        // Predicated region
        $region33: #{tpu_custom_call.1} parent=31 // pred_check
          %p340 = pneg %p53
        $region34: #{tpu_custom_call.1} parent=31 // pred_check_branch
          %342 = sbr.rel (%p340) target = $region36
        $region35: #{tpu_custom_call.1} parent=31 // pred_region
          %s343 = sand.u32 %s43, 1
          %s344 = scalar_lea.sflag [#allocation3], %s343
          %s345 = sand.u32 %s43, 1
          %s346 = smul.addr %s345, 8
          %s347 = scalar_lea.vmem [#allocation2], %s346
          %s349 = ssub.s32 128, 128
          %350 = vsyncadd %s344, %s349
          %s351 = smul.addr %s33, 128
          %s352 = scalar_lea.hbm %s0, %s351
          %s354 = sshll.u32 %s347, 4
          %s355 = int_to_ptr.vmem [resolvable:$true] %s354
          %357 = dma.hbm_to_vmem [thread:$0]  %s352, 128, %s355, %s344
        $region36: #{tpu_custom_call.1} parent=31 // pred_fallthru
          _
        // Predicated region
        $region37: #{tpu_custom_call.1} parent=31 // pred_check
          %p358 = pneg %p79
        $region38: #{tpu_custom_call.1} parent=31 // pred_check_branch
          %360 = sbr.rel (%p358) target = $region40
        $region39: #{tpu_custom_call.1} parent=31 // pred_region
          %s361 = sand.u32 %s33, 1
          %s362 = scalar_lea.sflag [#allocation6], %s361
          %s363 = sand.u32 %s69, 1
          %s364 = smul.addr %s363, 8
          %s365 = scalar_lea.vmem [#allocation5], %s364
          %s367 = ssub.s32 128, 128
          %368 = vsyncadd %s362, %s367
          %s369 = smul.addr %s33, 128
          %s370 = scalar_lea.hbm %s1, %s369
          %s372 = sshll.u32 %s365, 4
          %s373 = int_to_ptr.vmem [resolvable:$true] %s372
          %375 = dma.hbm_to_vmem [thread:$0]  %s370, 128, %s373, %s362
        $region40: #{tpu_custom_call.1} parent=31 // pred_fallthru
          _
        // Predicated region
        $region41: #{tpu_custom_call.1} parent=31 // pred_check
          %p376 = pneg %p105
        $region42: #{tpu_custom_call.1} parent=31 // pred_check_branch
          %378 = sbr.rel (%p376) target = $region44
        $region43: #{tpu_custom_call.1} parent=31 // pred_region
          %s379 = sand.u32 %s33, 1
          %s380 = scalar_lea.sflag [#allocation6], %s379
          %s381 = sand.u32 %s95, 1
          %s382 = scalar_lea.vmem [#allocation7], %s381
          %s384 = ssub.s32 16, 16
          %385 = vsyncadd %s380, %s384
          %s386 = smul.addr %s33, 16
          %s387 = scalar_lea.hbm %s2, %s386
          %s389 = sshll.u32 %s382, 4
          %s390 = int_to_ptr.vmem [resolvable:$true] %s389
          %392 = dma.hbm_to_vmem [thread:$0]  %s387, 16, %s390, %s380
        $region44: #{tpu_custom_call.1} parent=31 // pred_fallthru
          _
        // Predicated region
        $region45: #{tpu_custom_call.1} parent=31 // pred_check
          %p393 = pneg %p131
        $region46: #{tpu_custom_call.1} parent=31 // pred_check_branch
          %395 = sbr.rel (%p393) target = $region48
        $region47: #{tpu_custom_call.1} parent=31 // pred_region
          %s396 = sand.u32 %s33, 1
          %s397 = scalar_lea.sflag [#allocation9], %s396
          %s398 = sand.u32 %s121, 1
          %s399 = scalar_lea.vmem [#allocation8], %s398
          %s401 = ssub.s32 16, 16
          %402 = vsyncadd %s397, %s401
          %s403 = smul.addr %s33, 16
          %s404 = scalar_lea.hbm %s3, %s403
          %s406 = sshll.u32 %s399, 4
          %s407 = int_to_ptr.vmem [resolvable:$true] %s406
          %409 = dma.hbm_to_vmem [thread:$0]  %s404, 16, %s407, %s397
        $region48: #{tpu_custom_call.1} parent=31 // pred_fallthru
          _
      $region32: #{tpu_custom_call.1} parent=5 // pred_fallthru
        _
      %p410 = scmp.le.s32.totalorder 1, %s33
      %p411 = scmp.lt.s32.totalorder %s33, 3
      %p412 = pnand %p410, %p411
      %p413 = pneg %p412
      // Predicated region
      $region49: #{tpu_custom_call.1} parent=5 // pred_check
        _
      $region50: #{tpu_custom_call.1} parent=5 // pred_check_branch
        %415 = sbr.rel (%p412) target = $region52
      $region51: #{tpu_custom_call.1} parent=5 // pred_region
        %s416 = ssub.s32 %s33, 1
        %s417 = sand.u32 %s46, 1
        %s418 = scalar_lea.sflag [#allocation3], %s417
        %s419 = sand.u32 %s46, 1
        %s420 = smul.addr %s419, 8
        %s421 = scalar_lea.vmem [#allocation2], %s420
        // Predicated region
        $region53: #{tpu_custom_call.1} parent=51 // pred_check
          %p422 = pneg %p59
        $region54: #{tpu_custom_call.1} parent=51 // pred_check_branch
          %424 = sbr.rel (%p422) target = $region56
        $region55: #{tpu_custom_call.1} parent=51 // pred_region
          %425 = dma.done %s418, 128
        $region56: #{tpu_custom_call.1} parent=51 // pred_fallthru
          _
        %s426 = sand.u32 %s38, 1
        %s427 = scalar_lea.sflag [#allocation6], %s426
        %s428 = sand.u32 %s72, 1
        %s429 = smul.addr %s428, 8
        %s430 = scalar_lea.vmem [#allocation5], %s429
        // Predicated region
        $region57: #{tpu_custom_call.1} parent=51 // pred_check
          %p431 = pneg %p85
        $region58: #{tpu_custom_call.1} parent=51 // pred_check_branch
          %433 = sbr.rel (%p431) target = $region60
        $region59: #{tpu_custom_call.1} parent=51 // pred_region
          %434 = dma.done %s427, 128
        $region60: #{tpu_custom_call.1} parent=51 // pred_fallthru
          _
        %s435 = sand.u32 %s38, 1
        %s436 = scalar_lea.sflag [#allocation6], %s435
        %s437 = sand.u32 %s98, 1
        %s438 = scalar_lea.vmem [#allocation7], %s437
        // Predicated region
        $region61: #{tpu_custom_call.1} parent=51 // pred_check
          %p439 = pneg %p111
        $region62: #{tpu_custom_call.1} parent=51 // pred_check_branch
          %441 = sbr.rel (%p439) target = $region64
        $region63: #{tpu_custom_call.1} parent=51 // pred_region
          %442 = dma.done %s436, 16
        $region64: #{tpu_custom_call.1} parent=51 // pred_fallthru
          _
        %s443 = sand.u32 %s38, 1
        %s444 = scalar_lea.sflag [#allocation9], %s443
        %s445 = sand.u32 %s124, 1
        %s446 = scalar_lea.vmem [#allocation8], %s445
        // Predicated region
        $region65: #{tpu_custom_call.1} parent=51 // pred_check
          %p447 = pneg %p137
        $region66: #{tpu_custom_call.1} parent=51 // pred_check_branch
          %449 = sbr.rel (%p447) target = $region68
        $region67: #{tpu_custom_call.1} parent=51 // pred_region
          %450 = dma.done %s444, 16
        $region68: #{tpu_custom_call.1} parent=51 // pred_fallthru
          _
        // Predicated region
        $region69: #{tpu_custom_call.1} parent=51 // pred_check
          %p451 = pneg %p158
        $region70: #{tpu_custom_call.1} parent=51 // pred_check_branch
          %453 = sbr.rel (%p451) target = $region72
        $region71: #{tpu_custom_call.1} parent=51 // pred_region
          %454 = dma.done [#allocation9], 1536
        $region72: #{tpu_custom_call.1} parent=51 // pred_fallthru
          _
        // Predicated region
        $region73: #{tpu_custom_call.1} parent=51 // pred_check
          %p455 = pneg %p179
        $region74: #{tpu_custom_call.1} parent=51 // pred_check_branch
          %457 = sbr.rel (%p455) target = $region76
        $region75: #{tpu_custom_call.1} parent=51 // pred_region
          %458 = dma.done [#allocation12], 16
        $region76: #{tpu_custom_call.1} parent=51 // pred_fallthru
          _
        // Predicated region
        $region77: #{tpu_custom_call.1} parent=51 // pred_check
          %p459 = pneg %p200
        $region78: #{tpu_custom_call.1} parent=51 // pred_check_branch
          %461 = sbr.rel (%p459) target = $region80
        $region79: #{tpu_custom_call.1} parent=51 // pred_region
          %462 = dma.done [#allocation12], 512
        $region80: #{tpu_custom_call.1} parent=51 // pred_fallthru
          _
        // Predicated region
        $region81: #{tpu_custom_call.1} parent=51 // pred_check
          %p463 = pneg %p221
        $region82: #{tpu_custom_call.1} parent=51 // pred_check_branch
          %465 = sbr.rel (%p463) target = $region84
        $region83: #{tpu_custom_call.1} parent=51 // pred_region
          %466 = dma.done [#allocation15], 16
        $region84: #{tpu_custom_call.1} parent=51 // pred_fallthru
          _
        %s467 = sand.u32 %s46, 1
        %s468 = scalar_lea.sflag [#allocation3], %s467
        %s469 = sand.u32 %s46, 1
        %s470 = smul.addr %s469, 8
        %s471 = scalar_lea.vmem [#allocation2], %s470
        %p472 = pneg %p59
        %p473 = pneg %p56
        %s474 = sand.u32 %s38, 1
        %s475 = scalar_lea.sflag [#allocation6], %s474
        %s476 = sand.u32 %s72, 1
        %s477 = smul.addr %s476, 8
        %s478 = scalar_lea.vmem [#allocation5], %s477
        %p479 = pneg %p85
        %p480 = pneg %p82
        %s481 = sand.u32 %s38, 1
        %s482 = scalar_lea.sflag [#allocation6], %s481
        %s483 = sand.u32 %s98, 1
        %s484 = scalar_lea.vmem [#allocation7], %s483
        %p485 = pneg %p111
        %p486 = pneg %p108
        %s487 = sand.u32 %s38, 1
        %s488 = scalar_lea.sflag [#allocation9], %s487
        %s489 = sand.u32 %s124, 1
        %s490 = scalar_lea.vmem [#allocation8], %s489
        %p491 = pneg %p137
        %p492 = pneg %p134
        %p493 = pneg %p158
        %p494 = pneg %p155
        %p495 = pneg %p179
        %p496 = pneg %p176
        %p497 = pneg %p200
        %p498 = pneg %p197
        %p499 = pneg %p221
        %p500 = pneg %p218
        %p501 = pneg %p247
        %p502 = pneg %p244
        %s503 = sand.u32 %s234, 1
        %s504 = scalar_lea.sflag [#allocation4], %s503
        %s505 = sand.u32 %s234, 1
        %s506 = smul.addr %s505, 8
        %s507 = scalar_lea.vmem [#allocation16], %s506
        %p508 = pneg %p273
        %p509 = pneg %p270
        %s510 = sand.u32 %s260, 1
        %s511 = scalar_lea.sflag [#allocation18], %s510
        %s512 = sand.u32 %s260, 1
        %s513 = smul.addr %s512, 8
        %s514 = scalar_lea.vmem [#allocation17], %s513
        %v515 = vld [vmem:[%s421] sm:$0xff]
        %v516 = vld [vmem:[%s430] sm:$0xff]
        %v517 = vld [vmem:[%s438] sm:$0x1]
        %v518 = vld [vmem:[%s446] sm:$0x1]
        %v519 = vlaneseq
        %v520 = vshrl.u32 %v519, 7
        %v521 = vlaneseq
        %v522 = vshrl.u32 %v521, 7
        %v523 = vsub.s32 0, %v522
        %v524 = vrot.slane %v517, %v523
        %525 = vset.pattern.permute.xlu0 0
        %526 = vperm.xlu0 %525, %v524
        %v527 = vpop.permute.xlu0 %526
        %vm528 = vcmp.lt.s32.totalorder %v520, %v527
        %v529 = vlaneseq
        %v530 = vand.u32 %v529, 127
        %v531 = vlaneseq
        %v532 = vshrl.u32 %v531, 7
        %v533 = vsub.s32 0, %v532
        %v534 = vrot.slane %v518, %v533
        %535 = vset.pattern.permute.xlu0 0
        %536 = vperm.xlu0 %535, %v534
        %v537 = vpop.permute.xlu0 %536
        %vm538 = vcmp.lt.s32.totalorder %v530, %v537
        %vm539 = vcmp.lt.s32.totalorder %v530, %v527
        %vm540 = vcmp.lt.s32.totalorder %v520, %v537
        %v541 = vld [vmem:[#allocation10] sm:$0xff]
        %v542 = vld [vmem:[#allocation10 + $0x8] sm:$0xff]
        %v543 = vld [vmem:[#allocation10 + $0x10] sm:$0xff]
        %v544 = vld [vmem:[#allocation10 + $0x18] sm:$0xff]
        %v545 = vld [vmem:[#allocation10 + $0x20] sm:$0xff]
        %v546 = vld [vmem:[#allocation10 + $0x28] sm:$0xff]
        %v547 = vld [vmem:[#allocation10 + $0x30] sm:$0xff]
        %v548 = vld [vmem:[#allocation10 + $0x38] sm:$0xff]
        %v549 = vld [vmem:[#allocation10 + $0x40] sm:$0xff]
        %v550 = vld [vmem:[#allocation10 + $0x48] sm:$0xff]
        %v551 = vld [vmem:[#allocation10 + $0x50] sm:$0xff]
        %v552 = vld [vmem:[#allocation10 + $0x58] sm:$0xff]
        %v553 = vld [vmem:[#allocation11] sm:$0x1]
        %v555 = vlaneseq
        %v556 = vshrl.u32 %v555, 7
        %v557 = vsub.s32 0, %v556
        %v558 = vrot.slane %v553, %v557
        %vm560 = vcmask 261120
        %v562 = vsel %vm560, %v515, 0
        %v565 = vsel %vm560, %v541, 0
        %v568 = vsel %vm560, %v542, 0
        %v571 = vsel %vm560, %v543, 0
        %v574 = vsel %vm560, %v544, 0
        %v577 = vsel %vm560, %v545, 0
        %v580 = vsel %vm560, %v546, 0
        %v583 = vsel %vm560, %v547, 0
        %v586 = vsel %vm560, %v548, 0
        %v589 = vsel %vm560, %v549, 0
        %v592 = vsel %vm560, %v550, 0
        %v595 = vsel %vm560, %v551, 0
        %v598 = vsel %vm560, %v552, 0
        %600 = vmatprep.subr.mxu0 0.0
        %601 = vmatpush1.xpose.msra.mxu0 %v565
        %602 = vmatprep.subr.mxu0 0.0
        %603 = vmatpush1.xpose.msra.mxu0 %v568
        %604 = vmatprep.subr.mxu0 0.0
        %605 = vmatpush1.xpose.msra.mxu0 %v571
        %606 = vmatprep.subr.mxu0 0.0
        %607 = vmatpush1.xpose.msra.mxu0 %v574
        %608 = vmatprep.subr.mxu0 0.0
        %609 = vmatpush1.xpose.msra.mxu0 %v577
        %610 = vmatprep.subr.mxu0 0.0
        %611 = vmatpush1.xpose.msra.mxu0 %v580
        %612 = vmatprep.subr.mxu0 0.0
        %613 = vmatpush1.xpose.msra.mxu0 %v583
        %614 = vmatprep.subr.mxu0 0.0
        %615 = vmatpush1.xpose.msra.mxu0 %v586
        %616 = vmatprep.subr.mxu0 0.0
        %617 = vmatpush1.xpose.msra.mxu0 %v589
        %618 = vmatprep.subr.mxu0 0.0
        %619 = vmatpush1.xpose.msra.mxu0 %v592
        %620 = vmatprep.subr.mxu0 0.0
        %621 = vmatpush1.xpose.msra.mxu0 %v595
        %622 = vmatprep.subr.mxu0 0.0
        %623 = vmatpush1.xpose.msra.mxu0 %v598
        %624 = vmatprep.subr.mxu0 0.0
        %625 = vmatpush1.xpose.msra.mxu0 0.0
        %626 = vmatprep.subr.mxu0 0.0
        %627 = vmatpush1.xpose.msra.mxu0 0.0
        %628 = vmatprep.subr.mxu0 0.0
        %629 = vmatpush1.xpose.msra.mxu0 0.0
        %630 = vmatprep.subr.mxu0 0.0
        %631 = vmatpush1.xpose.msra.mxu0 0.0
        %632 = vmatprep.subr.mxu0 0.0
        %633 = vmatpush1.xpose.msra.mxu0 0.0
        %634 = vmatprep.subr.mxu0 0.0
        %635 = vmatpush1.xpose.msra.mxu0 0.0
        %636 = vmatprep.subr.mxu0 0.0
        %637 = vmatpush1.xpose.msra.mxu0 0.0
        %638 = vmatprep.subr.mxu0 0.0
        %639 = vmatpush1.xpose.msra.mxu0 0.0
        %640 = vmatprep.subr.mxu0 0.0
        %641 = vmatpush1.xpose.msra.mxu0 0.0
        %642 = vmatprep.subr.mxu0 0.0
        %643 = vmatpush1.xpose.msra.mxu0 0.0
        %644 = vmatprep.subr.mxu0 0.0
        %645 = vmatpush1.xpose.msra.mxu0 0.0
        %646 = vmatprep.subr.mxu0 0.0
        %647 = vmatpush1.xpose.msra.mxu0 0.0
        %648 = vmatprep.subr.mxu0 0.0
        %649 = vmatpush1.xpose.msra.mxu0 0.0
        %650 = vmatprep.subr.mxu0 0.0
        %651 = vmatpush1.xpose.msra.mxu0 0.0
        %652 = vmatprep.subr.mxu0 0.0
        %653 = vmatpush1.xpose.msra.mxu0 0.0
        %654 = vmatprep.subr.mxu0 0.0
        %655 = vmatpush1.xpose.msra.mxu0 0.0
        %656 = vmatprep.subr.mxu0 0.0
        %657 = vmatpush1.xpose.msra.mxu0 0.0
        %658 = vmatprep.subr.mxu0 0.0
        %659 = vmatpush1.xpose.msra.mxu0 0.0
        %660 = vmatprep.subr.mxu0 0.0
        %661 = vmatpush1.xpose.msra.mxu0 0.0
        %662 = vmatprep.subr.mxu0 0.0
        %663 = vmatpush1.xpose.msra.mxu0 0.0
        %664 = vmatprep.mubr.f32.mxu0 0.0
        %665 = vmatmul.mubr.f32.gmra.mrb[0].mxu0 %v562
        %v666 = vpop.f32.mrb[0].mxu0
        %v667 = vadd.f32 %v558, %v666
        %v668 = vpop.f32.mrb[0].mxu0
        %669 = vdwg.mxu0
        %v671 = vsel %vm560, %v667, 0
        %v674 = vsel %vm560, %v516, 0
        %676 = vmatprep.subr.mxu0 0.0
        %677 = vmatpush1.xpose.msra.mxu0 %v674
        %678 = vmatprep.subr.mxu0 0.0
        %679 = vmatpush1.xpose.msra.mxu0 0.0
        %680 = vmatprep.subr.mxu0 0.0
        %681 = vmatpush1.xpose.msra.mxu0 0.0
        %682 = vmatprep.subr.mxu0 0.0
        %683 = vmatpush1.xpose.msra.mxu0 0.0
        %684 = vmatprep.subr.mxu0 0.0
        %685 = vmatpush1.xpose.msra.mxu0 0.0
        %686 = vmatprep.subr.mxu0 0.0
        %687 = vmatpush1.xpose.msra.mxu0 0.0
        %688 = vmatprep.subr.mxu0 0.0
        %689 = vmatpush1.xpose.msra.mxu0 0.0
        %690 = vmatprep.subr.mxu0 0.0
        %691 = vmatpush1.xpose.msra.mxu0 0.0
        %692 = vmatprep.subr.mxu0 0.0
        %693 = vmatpush1.xpose.msra.mxu0 0.0
        %694 = vmatprep.subr.mxu0 0.0
        %695 = vmatpush1.xpose.msra.mxu0 0.0
        %696 = vmatprep.subr.mxu0 0.0
        %697 = vmatpush1.xpose.msra.mxu0 0.0
        %698 = vmatprep.subr.mxu0 0.0
        %699 = vmatpush1.xpose.msra.mxu0 0.0
        %700 = vmatprep.subr.mxu0 0.0
        %701 = vmatpush1.xpose.msra.mxu0 0.0
        %702 = vmatprep.subr.mxu0 0.0
        %703 = vmatpush1.xpose.msra.mxu0 0.0
        %704 = vmatprep.subr.mxu0 0.0
        %705 = vmatpush1.xpose.msra.mxu0 0.0
        %706 = vmatprep.subr.mxu0 0.0
        %707 = vmatpush1.xpose.msra.mxu0 0.0
        %708 = vmatprep.subr.mxu0 0.0
        %709 = vmatpush1.xpose.msra.mxu0 0.0
        %710 = vmatprep.subr.mxu0 0.0
        %711 = vmatpush1.xpose.msra.mxu0 0.0
        %712 = vmatprep.subr.mxu0 0.0
        %713 = vmatpush1.xpose.msra.mxu0 0.0
        %714 = vmatprep.subr.mxu0 0.0
        %715 = vmatpush1.xpose.msra.mxu0 0.0
        %716 = vmatprep.subr.mxu0 0.0
        %717 = vmatpush1.xpose.msra.mxu0 0.0
        %718 = vmatprep.subr.mxu0 0.0
        %719 = vmatpush1.xpose.msra.mxu0 0.0
        %720 = vmatprep.subr.mxu0 0.0
        %721 = vmatpush1.xpose.msra.mxu0 0.0
        %722 = vmatprep.subr.mxu0 0.0
        %723 = vmatpush1.xpose.msra.mxu0 0.0
        %724 = vmatprep.subr.mxu0 0.0
        %725 = vmatpush1.xpose.msra.mxu0 0.0
        %726 = vmatprep.subr.mxu0 0.0
        %727 = vmatpush1.xpose.msra.mxu0 0.0
        %728 = vmatprep.subr.mxu0 0.0
        %729 = vmatpush1.xpose.msra.mxu0 0.0
        %730 = vmatprep.subr.mxu0 0.0
        %731 = vmatpush1.xpose.msra.mxu0 0.0
        %732 = vmatprep.subr.mxu0 0.0
        %733 = vmatpush1.xpose.msra.mxu0 0.0
        %734 = vmatprep.subr.mxu0 0.0
        %735 = vmatpush1.xpose.msra.mxu0 0.0
        %736 = vmatprep.subr.mxu0 0.0
        %737 = vmatpush1.xpose.msra.mxu0 0.0
        %738 = vmatprep.subr.mxu0 0.0
        %739 = vmatpush1.xpose.msra.mxu0 0.0
        %740 = vmatprep.mubr.f32.mxu0 0.0
        %741 = vmatmul.mubr.f32.gmra.mrb[0].mxu0 %v671
        %v742 = vpop.f32.mrb[0].mxu0
        %v743 = vadd.f32 0.0, %v742
        %v744 = vpop.f32.mrb[0].mxu0
        %745 = vdwg.mxu0
        %746 = vxpose.xlu0.b32.start [1/16] %v743, 128
        %747 = vxpose.xlu0.b32.cont [2/16] 0.0, 128
        %748 = vxpose.xlu0.b32.cont [3/16] 0.0, 128
        %749 = vxpose.xlu0.b32.cont [4/16] 0.0, 128
        %750 = vxpose.xlu0.b32.cont [5/16] 0.0, 128
        %751 = vxpose.xlu0.b32.cont [6/16] 0.0, 128
        %752 = vxpose.xlu0.b32.cont [7/16] 0.0, 128
        %753 = vxpose.xlu0.b32.cont [8/16] 0.0, 128
        %754 = vxpose.xlu0.b32.cont [9/16] 0.0, 128
        %755 = vxpose.xlu0.b32.cont [10/16] 0.0, 128
        %756 = vxpose.xlu0.b32.cont [11/16] 0.0, 128
        %757 = vxpose.xlu0.b32.cont [12/16] 0.0, 128
        %758 = vxpose.xlu0.b32.cont [13/16] 0.0, 128
        %759 = vxpose.xlu0.b32.cont [14/16] 0.0, 128
        %760 = vxpose.xlu0.b32.cont [15/16] 0.0, 128
        %761 = vxpose.xlu0.b32.end [16/16] 0.0, 128
        %v762 = vpop.trf.xlu0
        %v763 = vpop.trf.xlu0
        %v764 = vpop.trf.xlu0
        %v765 = vpop.trf.xlu0
        %v766 = vpop.trf.xlu0
        %v767 = vpop.trf.xlu0
        %v768 = vpop.trf.xlu0
        %v769 = vpop.trf.xlu0
        %v770 = vpop.trf.xlu0
        %v771 = vpop.trf.xlu0
        %v772 = vpop.trf.xlu0
        %v773 = vpop.trf.xlu0
        %v774 = vpop.trf.xlu0
        %v775 = vpop.trf.xlu0
        %v776 = vpop.trf.xlu0
        %v777 = vpop.trf.xlu0
        %v778 = vsel %vm528, %v743, -inf
        %v779 = vsel %vm540, %v762, -inf
        %vm780 = vcmask 64512
        %v781 = vsel %vm780, %v778, -inf
        %782 = vmax.xlane.f32.xlu0 %v781
        %v783 = vpop.xlane.xlu0 %782
        %v784 = vrot.slane %v783, 4
        %v785 = vmax.f32 %v783, %v784
        %v786 = vrot.slane %v785, 2
        %v787 = vmax.f32 %v785, %v786
        %v788 = vrot.slane %v787, 1
        %v789 = vmax.f32 %v787, %v788
        %v790 = vsub.f32 %v783, %v789
        %v791 = vmul.f32 %v790, 1.442695
        %v792 = vpow.pop %v791
        %v793 = vrot.slane %v792, 4
        %v794 = vadd.f32 %v792, %v793
        %v795 = vrot.slane %v794, 2
        %v796 = vadd.f32 %v794, %v795
        %v797 = vrot.slane %v796, 1
        %v798 = vadd.f32 %v796, %v797
        %v799 = vrcp.pop %v798
        %v800 = vmul.f32 %v792, %v799
        %v801 = vsel %vm780, %v779, -inf
        %802 = vmax.xlane.f32.xlu0 %v801
        %v803 = vpop.xlane.xlu0 %802
        %v804 = vrot.slane %v803, 4
        %v805 = vmax.f32 %v803, %v804
        %v806 = vrot.slane %v805, 2
        %v807 = vmax.f32 %v805, %v806
        %v808 = vrot.slane %v807, 1
        %v809 = vmax.f32 %v807, %v808
        %v810 = vsub.f32 %v803, %v809
        %v811 = vmul.f32 %v810, 1.442695
        %v812 = vpow.pop %v811
        %v813 = vrot.slane %v812, 4
        %v814 = vadd.f32 %v812, %v813
        %v815 = vrot.slane %v814, 2
        %v816 = vadd.f32 %v814, %v815
        %v817 = vrot.slane %v816, 1
        %v818 = vadd.f32 %v816, %v817
        %v819 = vrcp.pop %v818
        %v820 = vmul.f32 %v812, %v819
        %v821 = vmul.f32 %v800, %v515
        %v822 = vmul.f32 %v820, %v516
        %823 = vrot.lane.b32.xlu0 %v667, 96
        %v824 = vpop.permute.xlu0 %823
        %v825 = vsel %vm560, %v824, 0
        %827 = vmatprep.subr.mxu0 0.0
        %828 = vmatpush1.xpose.msra.mxu0 %v674
        %829 = vmatprep.subr.mxu0 0.0
        %830 = vmatpush1.xpose.msra.mxu0 0.0
        %831 = vmatprep.subr.mxu0 0.0
        %832 = vmatpush1.xpose.msra.mxu0 0.0
        %833 = vmatprep.subr.mxu0 0.0
        %834 = vmatpush1.xpose.msra.mxu0 0.0
        %835 = vmatprep.subr.mxu0 0.0
        %836 = vmatpush1.xpose.msra.mxu0 0.0
        %837 = vmatprep.subr.mxu0 0.0
        %838 = vmatpush1.xpose.msra.mxu0 0.0
        %839 = vmatprep.subr.mxu0 0.0
        %840 = vmatpush1.xpose.msra.mxu0 0.0
        %841 = vmatprep.subr.mxu0 0.0
        %842 = vmatpush1.xpose.msra.mxu0 0.0
        %843 = vmatprep.subr.mxu0 0.0
        %844 = vmatpush1.xpose.msra.mxu0 0.0
        %845 = vmatprep.subr.mxu0 0.0
        %846 = vmatpush1.xpose.msra.mxu0 0.0
        %847 = vmatprep.subr.mxu0 0.0
        %848 = vmatpush1.xpose.msra.mxu0 0.0
        %849 = vmatprep.subr.mxu0 0.0
        %850 = vmatpush1.xpose.msra.mxu0 0.0
        %851 = vmatprep.subr.mxu0 0.0
        %852 = vmatpush1.xpose.msra.mxu0 0.0
        %853 = vmatprep.subr.mxu0 0.0
        %854 = vmatpush1.xpose.msra.mxu0 0.0
        %855 = vmatprep.subr.mxu0 0.0
        %856 = vmatpush1.xpose.msra.mxu0 0.0
        %857 = vmatprep.subr.mxu0 0.0
        %858 = vmatpush1.xpose.msra.mxu0 0.0
        %859 = vmatprep.subr.mxu0 0.0
        %860 = vmatpush1.xpose.msra.mxu0 0.0
        %861 = vmatprep.subr.mxu0 0.0
        %862 = vmatpush1.xpose.msra.mxu0 0.0
        %863 = vmatprep.subr.mxu0 0.0
        %864 = vmatpush1.xpose.msra.mxu0 0.0
        %865 = vmatprep.subr.mxu0 0.0
        %866 = vmatpush1.xpose.msra.mxu0 0.0
        %867 = vmatprep.subr.mxu0 0.0
        %868 = vmatpush1.xpose.msra.mxu0 0.0
        %869 = vmatprep.subr.mxu0 0.0
        %870 = vmatpush1.xpose.msra.mxu0 0.0
        %871 = vmatprep.subr.mxu0 0.0
        %872 = vmatpush1.xpose.msra.mxu0 0.0
        %873 = vmatprep.subr.mxu0 0.0
        %874 = vmatpush1.xpose.msra.mxu0 0.0
        %875 = vmatprep.subr.mxu0 0.0
        %876 = vmatpush1.xpose.msra.mxu0 0.0
        %877 = vmatprep.subr.mxu0 0.0
        %878 = vmatpush1.xpose.msra.mxu0 0.0
        %879 = vmatprep.subr.mxu0 0.0
        %880 = vmatpush1.xpose.msra.mxu0 0.0
        %881 = vmatprep.subr.mxu0 0.0
        %882 = vmatpush1.xpose.msra.mxu0 0.0
        %883 = vmatprep.subr.mxu0 0.0
        %884 = vmatpush1.xpose.msra.mxu0 0.0
        %885 = vmatprep.subr.mxu0 0.0
        %886 = vmatpush1.xpose.msra.mxu0 0.0
        %887 = vmatprep.subr.mxu0 0.0
        %888 = vmatpush1.xpose.msra.mxu0 0.0
        %889 = vmatprep.subr.mxu0 0.0
        %890 = vmatpush1.xpose.msra.mxu0 0.0
        %891 = vmatprep.mubr.f32.mxu0 0.0
        %892 = vmatmul.mubr.f32.gmra.mrb[0].mxu0 %v825
        %v893 = vpop.f32.mrb[0].mxu0
        %v894 = vadd.f32 0.0, %v893
        %v895 = vpop.f32.mrb[0].mxu0
        %896 = vdwg.mxu0
        %897 = vxpose.xlu0.b32.start [1/16] %v894, 128
        %898 = vxpose.xlu0.b32.cont [2/16] 0.0, 128
        %899 = vxpose.xlu0.b32.cont [3/16] 0.0, 128
        %900 = vxpose.xlu0.b32.cont [4/16] 0.0, 128
        %901 = vxpose.xlu0.b32.cont [5/16] 0.0, 128
        %902 = vxpose.xlu0.b32.cont [6/16] 0.0, 128
        %903 = vxpose.xlu0.b32.cont [7/16] 0.0, 128
        %904 = vxpose.xlu0.b32.cont [8/16] 0.0, 128
        %905 = vxpose.xlu0.b32.cont [9/16] 0.0, 128
        %906 = vxpose.xlu0.b32.cont [10/16] 0.0, 128
        %907 = vxpose.xlu0.b32.cont [11/16] 0.0, 128
        %908 = vxpose.xlu0.b32.cont [12/16] 0.0, 128
        %909 = vxpose.xlu0.b32.cont [13/16] 0.0, 128
        %910 = vxpose.xlu0.b32.cont [14/16] 0.0, 128
        %911 = vxpose.xlu0.b32.cont [15/16] 0.0, 128
        %912 = vxpose.xlu0.b32.end [16/16] 0.0, 128
        %v913 = vpop.trf.xlu0
        %v914 = vpop.trf.xlu0
        %v915 = vpop.trf.xlu0
        %v916 = vpop.trf.xlu0
        %v917 = vpop.trf.xlu0
        %v918 = vpop.trf.xlu0
        %v919 = vpop.trf.xlu0
        %v920 = vpop.trf.xlu0
        %v921 = vpop.trf.xlu0
        %v922 = vpop.trf.xlu0
        %v923 = vpop.trf.xlu0
        %v924 = vpop.trf.xlu0
        %v925 = vpop.trf.xlu0
        %v926 = vpop.trf.xlu0
        %v927 = vpop.trf.xlu0
        %v928 = vpop.trf.xlu0
        %v929 = vsel %vm528, %v894, -inf
        %v930 = vsel %vm540, %v913, -inf
        %v931 = vsel %vm780, %v929, 0.0
        %932 = vadd.xlane.f32.xlu0 %v931
        %v933 = vpop.xlane.xlu0 %932
        %v934 = vrcp.pop 8.0
        %v935 = vmul.f32 %v933, %v934
        %v936 = vrot.slane %v935, 4
        %v937 = vmax.f32 %v935, %v936
        %v938 = vrot.slane %v937, 2
        %v939 = vmax.f32 %v937, %v938
        %v940 = vrot.slane %v939, 1
        %v941 = vmax.f32 %v939, %v940
        %v942 = vsub.f32 %v935, %v941
        %v943 = vmul.f32 %v942, 1.442695
        %v944 = vpow.pop %v943
        %v945 = vrot.slane %v944, 4
        %v946 = vadd.f32 %v944, %v945
        %v947 = vrot.slane %v946, 2
        %v948 = vadd.f32 %v946, %v947
        %v949 = vrot.slane %v948, 1
        %v950 = vadd.f32 %v948, %v949
        %v951 = vrcp.pop %v950
        %v952 = vmul.f32 %v944, %v951
        %v953 = vsel %vm780, %v930, 0.0
        %954 = vadd.xlane.f32.xlu0 %v953
        %v955 = vpop.xlane.xlu0 %954
        %v956 = vmul.f32 %v955, %v934
        %v957 = vrot.slane %v956, 4
        %v958 = vmax.f32 %v956, %v957
        %v959 = vrot.slane %v958, 2
        %v960 = vmax.f32 %v958, %v959
        %v961 = vrot.slane %v960, 1
        %v962 = vmax.f32 %v960, %v961
        %v963 = vsub.f32 %v956, %v962
        %v964 = vmul.f32 %v963, 1.442695
        %v965 = vpow.pop %v964
        %v966 = vrot.slane %v965, 4
        %v967 = vadd.f32 %v965, %v966
        %v968 = vrot.slane %v967, 2
        %v969 = vadd.f32 %v967, %v968
        %v970 = vrot.slane %v969, 1
        %v971 = vadd.f32 %v969, %v970
        %v972 = vrcp.pop %v971
        %v973 = vmul.f32 %v965, %v972
        %v974 = vmul.f32 %v952, %v515
        %v975 = vmul.f32 %v973, %v516
        %976 = vrot.lane.b32.xlu0 %v667, 64
        %v977 = vpop.permute.xlu0 %976
        %v978 = vsel %vm560, %v977, 0
        %980 = vmatprep.subr.mxu0 0.0
        %981 = vmatpush1.xpose.msra.mxu0 %v674
        %982 = vmatprep.subr.mxu0 0.0
        %983 = vmatpush1.xpose.msra.mxu0 0.0
        %984 = vmatprep.subr.mxu0 0.0
        %985 = vmatpush1.xpose.msra.mxu0 0.0
        %986 = vmatprep.subr.mxu0 0.0
        %987 = vmatpush1.xpose.msra.mxu0 0.0
        %988 = vmatprep.subr.mxu0 0.0
        %989 = vmatpush1.xpose.msra.mxu0 0.0
        %990 = vmatprep.subr.mxu0 0.0
        %991 = vmatpush1.xpose.msra.mxu0 0.0
        %992 = vmatprep.subr.mxu0 0.0
        %993 = vmatpush1.xpose.msra.mxu0 0.0
        %994 = vmatprep.subr.mxu0 0.0
        %995 = vmatpush1.xpose.msra.mxu0 0.0
        %996 = vmatprep.subr.mxu0 0.0
        %997 = vmatpush1.xpose.msra.mxu0 0.0
        %998 = vmatprep.subr.mxu0 0.0
        %999 = vmatpush1.xpose.msra.mxu0 0.0
        %1000 = vmatprep.subr.mxu0 0.0
        %1001 = vmatpush1.xpose.msra.mxu0 0.0
        %1002 = vmatprep.subr.mxu0 0.0
        %1003 = vmatpush1.xpose.msra.mxu0 0.0
        %1004 = vmatprep.subr.mxu0 0.0
        %1005 = vmatpush1.xpose.msra.mxu0 0.0
        %1006 = vmatprep.subr.mxu0 0.0
        %1007 = vmatpush1.xpose.msra.mxu0 0.0
        %1008 = vmatprep.subr.mxu0 0.0
        %1009 = vmatpush1.xpose.msra.mxu0 0.0
        %1010 = vmatprep.subr.mxu0 0.0
        %1011 = vmatpush1.xpose.msra.mxu0 0.0
        %1012 = vmatprep.subr.mxu0 0.0
        %1013 = vmatpush1.xpose.msra.mxu0 0.0
        %1014 = vmatprep.subr.mxu0 0.0
        %1015 = vmatpush1.xpose.msra.mxu0 0.0
        %1016 = vmatprep.subr.mxu0 0.0
        %1017 = vmatpush1.xpose.msra.mxu0 0.0
        %1018 = vmatprep.subr.mxu0 0.0
        %1019 = vmatpush1.xpose.msra.mxu0 0.0
        %1020 = vmatprep.subr.mxu0 0.0
        %1021 = vmatpush1.xpose.msra.mxu0 0.0
        %1022 = vmatprep.subr.mxu0 0.0
        %1023 = vmatpush1.xpose.msra.mxu0 0.0
        %1024 = vmatprep.subr.mxu0 0.0
        %1025 = vmatpush1.xpose.msra.mxu0 0.0
        %1026 = vmatprep.subr.mxu0 0.0
        %1027 = vmatpush1.xpose.msra.mxu0 0.0
        %1028 = vmatprep.subr.mxu0 0.0
        %1029 = vmatpush1.xpose.msra.mxu0 0.0
        %1030 = vmatprep.subr.mxu0 0.0
        %1031 = vmatpush1.xpose.msra.mxu0 0.0
        %1032 = vmatprep.subr.mxu0 0.0
        %1033 = vmatpush1.xpose.msra.mxu0 0.0
        %1034 = vmatprep.subr.mxu0 0.0
        %1035 = vmatpush1.xpose.msra.mxu0 0.0
        %1036 = vmatprep.subr.mxu0 0.0
        %1037 = vmatpush1.xpose.msra.mxu0 0.0
        %1038 = vmatprep.subr.mxu0 0.0
        %1039 = vmatpush1.xpose.msra.mxu0 0.0
        %1040 = vmatprep.subr.mxu0 0.0
        %1041 = vmatpush1.xpose.msra.mxu0 0.0
        %1042 = vmatprep.subr.mxu0 0.0
        %1043 = vmatpush1.xpose.msra.mxu0 0.0
        %1044 = vmatprep.mubr.f32.mxu0 0.0
        %1045 = vmatmul.mubr.f32.gmra.mrb[0].mxu0 %v978
        %v1046 = vpop.f32.mrb[0].mxu0
        %v1047 = vadd.f32 0.0, %v1046
        %v1048 = vpop.f32.mrb[0].mxu0
        %1049 = vdwg.mxu0
        %1050 = vxpose.xlu0.b32.start [1/16] %v1047, 128
        %1051 = vxpose.xlu0.b32.cont [2/16] 0.0, 128
        %1052 = vxpose.xlu0.b32.cont [3/16] 0.0, 128
        %1053 = vxpose.xlu0.b32.cont [4/16] 0.0, 128
        %1054 = vxpose.xlu0.b32.cont [5/16] 0.0, 128
        %1055 = vxpose.xlu0.b32.cont [6/16] 0.0, 128
        %1056 = vxpose.xlu0.b32.cont [7/16] 0.0, 128
        %1057 = vxpose.xlu0.b32.cont [8/16] 0.0, 128
        %1058 = vxpose.xlu0.b32.cont [9/16] 0.0, 128
        %1059 = vxpose.xlu0.b32.cont [10/16] 0.0, 128
        %1060 = vxpose.xlu0.b32.cont [11/16] 0.0, 128
        %1061 = vxpose.xlu0.b32.cont [12/16] 0.0, 128
        %1062 = vxpose.xlu0.b32.cont [13/16] 0.0, 128
        %1063 = vxpose.xlu0.b32.cont [14/16] 0.0, 128
        %1064 = vxpose.xlu0.b32.cont [15/16] 0.0, 128
        %1065 = vxpose.xlu0.b32.end [16/16] 0.0, 128
        %v1066 = vpop.trf.xlu0
        %v1067 = vpop.trf.xlu0
        %v1068 = vpop.trf.xlu0
        %v1069 = vpop.trf.xlu0
        %v1070 = vpop.trf.xlu0
        %v1071 = vpop.trf.xlu0
        %v1072 = vpop.trf.xlu0
        %v1073 = vpop.trf.xlu0
        %v1074 = vpop.trf.xlu0
        %v1075 = vpop.trf.xlu0
        %v1076 = vpop.trf.xlu0
        %v1077 = vpop.trf.xlu0
        %v1078 = vpop.trf.xlu0
        %v1079 = vpop.trf.xlu0
        %v1080 = vpop.trf.xlu0
        %v1081 = vpop.trf.xlu0
        %v1082 = vsel %vm538, %v1047, -inf
        %v1083 = vsel %vm539, %v1066, -inf
        %v1084 = vsel %vm780, %v1082, -inf
        %1085 = vmax.xlane.f32.xlu0 %v1084
        %v1086 = vpop.xlane.xlu0 %1085
        %v1087 = vsub.f32 %v1082, %v1086
        %v1088 = vmul.f32 %v1087, 1.442695
        %v1089 = vpow.pop %v1088
        %v1090 = vsel %vm780, %v1089, 0.0
        %1091 = vadd.xlane.f32.xlu0 %v1090
        %v1092 = vpop.xlane.xlu0 %1091
        %v1093 = vrcp.pop %v1092
        %v1094 = vmul.f32 %v1089, %v1093
        %v1096 = vsel %vm780, %v1094, 0
        %1098 = vmatprep.subr.mxu0 0.0
        %1099 = vmatpush1.msra.mxu0 %v516
        %1100 = vmatprep.subr.mxu0 0.0
        %1101 = vmatpush1.msra.mxu0 0.0
        %1102 = vmatprep.subr.mxu0 0.0
        %1103 = vmatpush1.msra.mxu0 0.0
        %1104 = vmatprep.subr.mxu0 0.0
        %1105 = vmatpush1.msra.mxu0 0.0
        %1106 = vmatprep.subr.mxu0 0.0
        %1107 = vmatpush1.msra.mxu0 0.0
        %1108 = vmatprep.subr.mxu0 0.0
        %1109 = vmatpush1.msra.mxu0 0.0
        %1110 = vmatprep.subr.mxu0 0.0
        %1111 = vmatpush1.msra.mxu0 0.0
        %1112 = vmatprep.subr.mxu0 0.0
        %1113 = vmatpush1.msra.mxu0 0.0
        %1114 = vmatprep.subr.mxu0 0.0
        %1115 = vmatpush1.msra.mxu0 0.0
        %1116 = vmatprep.subr.mxu0 0.0
        %1117 = vmatpush1.msra.mxu0 0.0
        %1118 = vmatprep.subr.mxu0 0.0
        %1119 = vmatpush1.msra.mxu0 0.0
        %1120 = vmatprep.subr.mxu0 0.0
        %1121 = vmatpush1.msra.mxu0 0.0
        %1122 = vmatprep.subr.mxu0 0.0
        %1123 = vmatpush1.msra.mxu0 0.0
        %1124 = vmatprep.subr.mxu0 0.0
        %1125 = vmatpush1.msra.mxu0 0.0
        %1126 = vmatprep.subr.mxu0 0.0
        %1127 = vmatpush1.msra.mxu0 0.0
        %1128 = vmatprep.subr.mxu0 0.0
        %1129 = vmatpush1.msra.mxu0 0.0
        %1130 = vmatprep.subr.mxu0 0.0
        %1131 = vmatpush1.msra.mxu0 0.0
        %1132 = vmatprep.subr.mxu0 0.0
        %1133 = vmatpush1.msra.mxu0 0.0
        %1134 = vmatprep.subr.mxu0 0.0
        %1135 = vmatpush1.msra.mxu0 0.0
        %1136 = vmatprep.subr.mxu0 0.0
        %1137 = vmatpush1.msra.mxu0 0.0
        %1138 = vmatprep.subr.mxu0 0.0
        %1139 = vmatpush1.msra.mxu0 0.0
        %1140 = vmatprep.subr.mxu0 0.0
        %1141 = vmatpush1.msra.mxu0 0.0
        %1142 = vmatprep.subr.mxu0 0.0
        %1143 = vmatpush1.msra.mxu0 0.0
        %1144 = vmatprep.subr.mxu0 0.0
        %1145 = vmatpush1.msra.mxu0 0.0
        %1146 = vmatprep.subr.mxu0 0.0
        %1147 = vmatpush1.msra.mxu0 0.0
        %1148 = vmatprep.subr.mxu0 0.0
        %1149 = vmatpush1.msra.mxu0 0.0
        %1150 = vmatprep.subr.mxu0 0.0
        %1151 = vmatpush1.msra.mxu0 0.0
        %1152 = vmatprep.subr.mxu0 0.0
        %1153 = vmatpush1.msra.mxu0 0.0
        %1154 = vmatprep.subr.mxu0 0.0
        %1155 = vmatpush1.msra.mxu0 0.0
        %1156 = vmatprep.subr.mxu0 0.0
        %1157 = vmatpush1.msra.mxu0 0.0
        %1158 = vmatprep.subr.mxu0 0.0
        %1159 = vmatpush1.msra.mxu0 0.0
        %1160 = vmatprep.subr.mxu0 0.0
        %1161 = vmatpush1.msra.mxu0 0.0
        %1162 = vmatprep.mubr.f32.mxu0 0.0
        %1163 = vmatmul.mubr.f32.gmra.mrb[0].mxu0 %v1096
        %v1164 = vpop.f32.mrb[0].mxu0
        %v1165 = vadd.f32 0.0, %v1164
        %v1166 = vpop.f32.mrb[0].mxu0
        %1167 = vdwg.mxu0
        %v1168 = vsel %vm780, %v1083, -inf
        %1169 = vmax.xlane.f32.xlu0 %v1168
        %v1170 = vpop.xlane.xlu0 %1169
        %v1171 = vsub.f32 %v1083, %v1170
        %v1172 = vmul.f32 %v1171, 1.442695
        %v1173 = vpow.pop %v1172
        %v1174 = vsel %vm780, %v1173, 0.0
        %1175 = vadd.xlane.f32.xlu0 %v1174
        %v1176 = vpop.xlane.xlu0 %1175
        %v1177 = vrcp.pop %v1176
        %v1178 = vmul.f32 %v1173, %v1177
        %v1180 = vsel %vm780, %v1178, 0
        %1182 = vmatprep.subr.mxu0 0.0
        %1183 = vmatpush1.msra.mxu0 %v515
        %1184 = vmatprep.subr.mxu0 0.0
        %1185 = vmatpush1.msra.mxu0 0.0
        %1186 = vmatprep.subr.mxu0 0.0
        %1187 = vmatpush1.msra.mxu0 0.0
        %1188 = vmatprep.subr.mxu0 0.0
        %1189 = vmatpush1.msra.mxu0 0.0
        %1190 = vmatprep.subr.mxu0 0.0
        %1191 = vmatpush1.msra.mxu0 0.0
        %1192 = vmatprep.subr.mxu0 0.0
        %1193 = vmatpush1.msra.mxu0 0.0
        %1194 = vmatprep.subr.mxu0 0.0
        %1195 = vmatpush1.msra.mxu0 0.0
        %1196 = vmatprep.subr.mxu0 0.0
        %1197 = vmatpush1.msra.mxu0 0.0
        %1198 = vmatprep.subr.mxu0 0.0
        %1199 = vmatpush1.msra.mxu0 0.0
        %1200 = vmatprep.subr.mxu0 0.0
        %1201 = vmatpush1.msra.mxu0 0.0
        %1202 = vmatprep.subr.mxu0 0.0
        %1203 = vmatpush1.msra.mxu0 0.0
        %1204 = vmatprep.subr.mxu0 0.0
        %1205 = vmatpush1.msra.mxu0 0.0
        %1206 = vmatprep.subr.mxu0 0.0
        %1207 = vmatpush1.msra.mxu0 0.0
        %1208 = vmatprep.subr.mxu0 0.0
        %1209 = vmatpush1.msra.mxu0 0.0
        %1210 = vmatprep.subr.mxu0 0.0
        %1211 = vmatpush1.msra.mxu0 0.0
        %1212 = vmatprep.subr.mxu0 0.0
        %1213 = vmatpush1.msra.mxu0 0.0
        %1214 = vmatprep.subr.mxu0 0.0
        %1215 = vmatpush1.msra.mxu0 0.0
        %1216 = vmatprep.subr.mxu0 0.0
        %1217 = vmatpush1.msra.mxu0 0.0
        %1218 = vmatprep.subr.mxu0 0.0
        %1219 = vmatpush1.msra.mxu0 0.0
        %1220 = vmatprep.subr.mxu0 0.0
        %1221 = vmatpush1.msra.mxu0 0.0
        %1222 = vmatprep.subr.mxu0 0.0
        %1223 = vmatpush1.msra.mxu0 0.0
        %1224 = vmatprep.subr.mxu0 0.0
        %1225 = vmatpush1.msra.mxu0 0.0
        %1226 = vmatprep.subr.mxu0 0.0
        %1227 = vmatpush1.msra.mxu0 0.0
        %1228 = vmatprep.subr.mxu0 0.0
        %1229 = vmatpush1.msra.mxu0 0.0
        %1230 = vmatprep.subr.mxu0 0.0
        %1231 = vmatpush1.msra.mxu0 0.0
        %1232 = vmatprep.subr.mxu0 0.0
        %1233 = vmatpush1.msra.mxu0 0.0
        %1234 = vmatprep.subr.mxu0 0.0
        %1235 = vmatpush1.msra.mxu0 0.0
        %1236 = vmatprep.subr.mxu0 0.0
        %1237 = vmatpush1.msra.mxu0 0.0
        %1238 = vmatprep.subr.mxu0 0.0
        %1239 = vmatpush1.msra.mxu0 0.0
        %1240 = vmatprep.subr.mxu0 0.0
        %1241 = vmatpush1.msra.mxu0 0.0
        %1242 = vmatprep.subr.mxu0 0.0
        %1243 = vmatpush1.msra.mxu0 0.0
        %1244 = vmatprep.subr.mxu0 0.0
        %1245 = vmatpush1.msra.mxu0 0.0
        %1246 = vmatprep.mubr.f32.mxu0 0.0
        %1247 = vmatmul.mubr.f32.gmra.mrb[0].mxu0 %v1180
        %v1248 = vpop.f32.mrb[0].mxu0
        %v1249 = vadd.f32 0.0, %v1248
        %v1250 = vpop.f32.mrb[0].mxu0
        %1251 = vdwg.mxu0
        %v1252 = vld [vmem:[#allocation13] sm:$0xff]
        %v1253 = vld [vmem:[#allocation13 + $0x8] sm:$0xff]
        %v1254 = vld [vmem:[#allocation13 + $0x10] sm:$0x1]
        %v1255 = vld [vmem:[#allocation13 + $0x18] sm:$0x1]
        %v1256 = vld [vmem:[#allocation14] sm:$0x1]
        %v1257 = vmul.f32 %v821, %v515
        %v1258 = vmul.f32 %v974, %v515
        %v1259 = vmul.f32 %v1165, %v515
        %1261 = vrot.lane.b32.xlu0 %v974, 32
        %v1262 = vpop.permute.xlu0 %1261
        %1265 = vrot.lane.b32.xlu0 %v1165, 64
        %v1266 = vpop.permute.xlu0 %1265
        %1268 = vrot.lane.b32.xlu0 %v515, 96
        %v1269 = vpop.permute.xlu0 %1268
        %1272 = vrot.lane.b32.xlu0 %v1258, 32
        %v1273 = vpop.permute.xlu0 %1272
        %1276 = vrot.lane.b32.xlu0 %v1259, 64
        %v1277 = vpop.permute.xlu0 %1276
        %v1279 = vsel %vm560, %v821, %v1262
        %vm1280 = vcmask 523264
        %v1281 = vsel %vm1280, %v1279, %v1266
        %vm1282 = vcmask 785408
        %v1283 = vsel %vm1282, %v1281, %v1269
        %v1284 = vsel %vm560, %v1257, %v1273
        %v1285 = vsel %vm1280, %v1284, %v1277
        %v1287 = vlaneseq
        %v1288 = vshrl.u32 %v1287, 7
        %v1289 = vsub.s32 0, %v1288
        %v1290 = vrot.slane %v1256, %v1289
        %v1293 = vsel %vm1282, %v1285, 0
        %v1296 = vsel %vm1282, %v1253, 0
        %v1299 = vsel %vm1282, %v1255, 0
        %1301 = vmatprep.subr.mxu0 %v1296
        %1302 = vmatpush1.xpose.msra.mxu0 %v1252
        %1303 = vmatprep.subr.mxu0 %v1299
        %1304 = vmatpush1.xpose.msra.mxu0 %v1254
        %1305 = vmatprep.subr.mxu0 0.0
        %1306 = vmatpush1.xpose.msra.mxu0 0.0
        %1307 = vmatprep.subr.mxu0 0.0
        %1308 = vmatpush1.xpose.msra.mxu0 0.0
        %1309 = vmatprep.subr.mxu0 0.0
        %1310 = vmatpush1.xpose.msra.mxu0 0.0
        %1311 = vmatprep.subr.mxu0 0.0
        %1312 = vmatpush1.xpose.msra.mxu0 0.0
        %1313 = vmatprep.subr.mxu0 0.0
        %1314 = vmatpush1.xpose.msra.mxu0 0.0
        %1315 = vmatprep.subr.mxu0 0.0
        %1316 = vmatpush1.xpose.msra.mxu0 0.0
        %1317 = vmatprep.subr.mxu0 0.0
        %1318 = vmatpush1.xpose.msra.mxu0 0.0
        %1319 = vmatprep.subr.mxu0 0.0
        %1320 = vmatpush1.xpose.msra.mxu0 0.0
        %1321 = vmatprep.subr.mxu0 0.0
        %1322 = vmatpush1.xpose.msra.mxu0 0.0
        %1323 = vmatprep.subr.mxu0 0.0
        %1324 = vmatpush1.xpose.msra.mxu0 0.0
        %1325 = vmatprep.subr.mxu0 0.0
        %1326 = vmatpush1.xpose.msra.mxu0 0.0
        %1327 = vmatprep.subr.mxu0 0.0
        %1328 = vmatpush1.xpose.msra.mxu0 0.0
        %1329 = vmatprep.subr.mxu0 0.0
        %1330 = vmatpush1.xpose.msra.mxu0 0.0
        %1331 = vmatprep.subr.mxu0 0.0
        %1332 = vmatpush1.xpose.msra.mxu0 0.0
        %1333 = vmatprep.subr.mxu0 0.0
        %1334 = vmatpush1.xpose.msra.mxu0 0.0
        %1335 = vmatprep.subr.mxu0 0.0
        %1336 = vmatpush1.xpose.msra.mxu0 0.0
        %1337 = vmatprep.subr.mxu0 0.0
        %1338 = vmatpush1.xpose.msra.mxu0 0.0
        %1339 = vmatprep.subr.mxu0 0.0
        %1340 = vmatpush1.xpose.msra.mxu0 0.0
        %1341 = vmatprep.subr.mxu0 0.0
        %1342 = vmatpush1.xpose.msra.mxu0 0.0
        %1343 = vmatprep.subr.mxu0 0.0
        %1344 = vmatpush1.xpose.msra.mxu0 0.0
        %1345 = vmatprep.subr.mxu0 0.0
        %1346 = vmatpush1.xpose.msra.mxu0 0.0
        %1347 = vmatprep.subr.mxu0 0.0
        %1348 = vmatpush1.xpose.msra.mxu0 0.0
        %1349 = vmatprep.subr.mxu0 0.0
        %1350 = vmatpush1.xpose.msra.mxu0 0.0
        %1351 = vmatprep.subr.mxu0 0.0
        %1352 = vmatpush1.xpose.msra.mxu0 0.0
        %1353 = vmatprep.subr.mxu0 0.0
        %1354 = vmatpush1.xpose.msra.mxu0 0.0
        %1355 = vmatprep.subr.mxu0 0.0
        %1356 = vmatpush1.xpose.msra.mxu0 0.0
        %1357 = vmatprep.subr.mxu0 0.0
        %1358 = vmatpush1.xpose.msra.mxu0 0.0
        %1359 = vmatprep.subr.mxu0 0.0
        %1360 = vmatpush1.xpose.msra.mxu0 0.0
        %1361 = vmatprep.subr.mxu0 0.0
        %1362 = vmatpush1.xpose.msra.mxu0 0.0
        %1363 = vmatprep.subr.mxu0 0.0
        %1364 = vmatpush1.xpose.msra.mxu0 0.0
        %1365 = vmatprep.mubr.f32.mxu0 %v1293
        %1366 = vmatmul.mubr.f32.gmra.mrb[0].mxu0 %v1283
        %v1367 = vpop.f32.mrb[0].mxu0
        %v1368 = vadd.f32 %v1290, %v1367
        %v1369 = vpop.f32.mrb[0].mxu0
        %1370 = vdwg.mxu0
        %v1371 = vmax.f32 %v1368, 0.0
        %vm1372 = vcmask 72704
        %1373 = vst.msk [vmem:[%s507] sm:$0xff] %vm1372, %v1371
        %v1374 = vmul.f32 %v822, %v516
        %v1375 = vmul.f32 %v975, %v516
        %v1376 = vmul.f32 %v1249, %v516
        %1378 = vrot.lane.b32.xlu0 %v975, 32
        %v1379 = vpop.permute.xlu0 %1378
        %1382 = vrot.lane.b32.xlu0 %v1249, 64
        %v1383 = vpop.permute.xlu0 %1382
        %1385 = vrot.lane.b32.xlu0 %v516, 96
        %v1386 = vpop.permute.xlu0 %1385
        %1389 = vrot.lane.b32.xlu0 %v1375, 32
        %v1390 = vpop.permute.xlu0 %1389
        %1393 = vrot.lane.b32.xlu0 %v1376, 64
        %v1394 = vpop.permute.xlu0 %1393
        %v1396 = vsel %vm560, %v822, %v1379
        %v1397 = vsel %vm1280, %v1396, %v1383
        %v1398 = vsel %vm1282, %v1397, %v1386
        %v1399 = vsel %vm560, %v1374, %v1390
        %v1400 = vsel %vm1280, %v1399, %v1394
        %v1402 = vsel %vm1282, %v1400, 0
        %1404 = vmatprep.subr.mxu0 %v1296
        %1405 = vmatpush1.xpose.msra.mxu0 %v1252
        %1406 = vmatprep.subr.mxu0 %v1299
        %1407 = vmatpush1.xpose.msra.mxu0 %v1254
        %1408 = vmatprep.subr.mxu0 0.0
        %1409 = vmatpush1.xpose.msra.mxu0 0.0
        %1410 = vmatprep.subr.mxu0 0.0
        %1411 = vmatpush1.xpose.msra.mxu0 0.0
        %1412 = vmatprep.subr.mxu0 0.0
        %1413 = vmatpush1.xpose.msra.mxu0 0.0
        %1414 = vmatprep.subr.mxu0 0.0
        %1415 = vmatpush1.xpose.msra.mxu0 0.0
        %1416 = vmatprep.subr.mxu0 0.0
        %1417 = vmatpush1.xpose.msra.mxu0 0.0
        %1418 = vmatprep.subr.mxu0 0.0
        %1419 = vmatpush1.xpose.msra.mxu0 0.0
        %1420 = vmatprep.subr.mxu0 0.0
        %1421 = vmatpush1.xpose.msra.mxu0 0.0
        %1422 = vmatprep.subr.mxu0 0.0
        %1423 = vmatpush1.xpose.msra.mxu0 0.0
        %1424 = vmatprep.subr.mxu0 0.0
        %1425 = vmatpush1.xpose.msra.mxu0 0.0
        %1426 = vmatprep.subr.mxu0 0.0
        %1427 = vmatpush1.xpose.msra.mxu0 0.0
        %1428 = vmatprep.subr.mxu0 0.0
        %1429 = vmatpush1.xpose.msra.mxu0 0.0
        %1430 = vmatprep.subr.mxu0 0.0
        %1431 = vmatpush1.xpose.msra.mxu0 0.0
        %1432 = vmatprep.subr.mxu0 0.0
        %1433 = vmatpush1.xpose.msra.mxu0 0.0
        %1434 = vmatprep.subr.mxu0 0.0
        %1435 = vmatpush1.xpose.msra.mxu0 0.0
        %1436 = vmatprep.subr.mxu0 0.0
        %1437 = vmatpush1.xpose.msra.mxu0 0.0
        %1438 = vmatprep.subr.mxu0 0.0
        %1439 = vmatpush1.xpose.msra.mxu0 0.0
        %1440 = vmatprep.subr.mxu0 0.0
        %1441 = vmatpush1.xpose.msra.mxu0 0.0
        %1442 = vmatprep.subr.mxu0 0.0
        %1443 = vmatpush1.xpose.msra.mxu0 0.0
        %1444 = vmatprep.subr.mxu0 0.0
        %1445 = vmatpush1.xpose.msra.mxu0 0.0
        %1446 = vmatprep.subr.mxu0 0.0
        %1447 = vmatpush1.xpose.msra.mxu0 0.0
        %1448 = vmatprep.subr.mxu0 0.0
        %1449 = vmatpush1.xpose.msra.mxu0 0.0
        %1450 = vmatprep.subr.mxu0 0.0
        %1451 = vmatpush1.xpose.msra.mxu0 0.0
        %1452 = vmatprep.subr.mxu0 0.0
        %1453 = vmatpush1.xpose.msra.mxu0 0.0
        %1454 = vmatprep.subr.mxu0 0.0
        %1455 = vmatpush1.xpose.msra.mxu0 0.0
        %1456 = vmatprep.subr.mxu0 0.0
        %1457 = vmatpush1.xpose.msra.mxu0 0.0
        %1458 = vmatprep.subr.mxu0 0.0
        %1459 = vmatpush1.xpose.msra.mxu0 0.0
        %1460 = vmatprep.subr.mxu0 0.0
        %1461 = vmatpush1.xpose.msra.mxu0 0.0
        %1462 = vmatprep.subr.mxu0 0.0
        %1463 = vmatpush1.xpose.msra.mxu0 0.0
        %1464 = vmatprep.subr.mxu0 0.0
        %1465 = vmatpush1.xpose.msra.mxu0 0.0
        %1466 = vmatprep.subr.mxu0 0.0
        %1467 = vmatpush1.xpose.msra.mxu0 0.0
        %1468 = vmatprep.mubr.f32.mxu0 %v1402
        %1469 = vmatmul.mubr.f32.gmra.mrb[0].mxu0 %v1398
        %v1470 = vpop.f32.mrb[0].mxu0
        %v1471 = vadd.f32 %v1290, %v1470
        %v1472 = vpop.f32.mrb[0].mxu0
        %1473 = vdwg.mxu0
        %v1474 = vmax.f32 %v1471, 0.0
        %1475 = vst.msk [vmem:[%s514] sm:$0xff] %vm1372, %v1474
        %s1476 = sand.u32 %s234, 1
        %s1477 = scalar_lea.sflag [#allocation4], %s1476
        %s1478 = sand.u32 %s234, 1
        %s1479 = smul.addr %s1478, 8
        %s1480 = scalar_lea.vmem [#allocation16], %s1479
        %s1481 = sand.u32 %s260, 1
        %s1482 = scalar_lea.sflag [#allocation18], %s1481
        %s1483 = sand.u32 %s260, 1
        %s1484 = smul.addr %s1483, 8
        %s1485 = scalar_lea.vmem [#allocation17], %s1484
        // Predicated region
        $region85: #{tpu_custom_call.1} parent=51 // pred_check
          %p1486 = pneg %p244
        $region86: #{tpu_custom_call.1} parent=51 // pred_check_branch
          %1488 = sbr.rel (%p1486) target = $region88
        $region87: #{tpu_custom_call.1} parent=51 // pred_region
          %s1490 = ssub.s32 128, 128
          %1491 = vsyncadd %s1477, %s1490
          %s1492 = smul.addr %s38, 128
          %s1493 = scalar_lea.hbm %s8, %s1492
          %s1495 = sshll.u32 %s1480, 4
          %s1496 = int_to_ptr.vmem [resolvable:$true] %s1495
          %1498 = dma.vmem_to_hbm [thread:$0]  %s1496, 128, %s1493, %s1477
        $region88: #{tpu_custom_call.1} parent=51 // pred_fallthru
          _
        // Predicated region
        $region89: #{tpu_custom_call.1} parent=51 // pred_check
          %p1499 = pneg %p270
        $region90: #{tpu_custom_call.1} parent=51 // pred_check_branch
          %1501 = sbr.rel (%p1499) target = $region92
        $region91: #{tpu_custom_call.1} parent=51 // pred_region
          %s1503 = ssub.s32 128, 128
          %1504 = vsyncadd %s1482, %s1503
          %s1505 = smul.addr %s38, 128
          %s1506 = scalar_lea.hbm %s9, %s1505
          %s1508 = sshll.u32 %s1485, 4
          %s1509 = int_to_ptr.vmem [resolvable:$true] %s1508
          %1511 = dma.vmem_to_hbm [thread:$0]  %s1509, 128, %s1506, %s1482
        $region92: #{tpu_custom_call.1} parent=51 // pred_fallthru
          _
      $region52: #{tpu_custom_call.1} parent=5 // pred_fallthru
        _
      %p1512 = scmp.le.s32.totalorder 2, %s33
      // Predicated region
      $region93: #{tpu_custom_call.1} parent=5 // pred_check
        %p1513 = pneg %p1512
      $region94: #{tpu_custom_call.1} parent=5 // pred_check_branch
        %1515 = sbr.rel (%p1513) target = $region96
      $region95: #{tpu_custom_call.1} parent=5 // pred_region
        %s1516 = ssub.s32 %s33, 2
        // Predicated region
        $region97: #{tpu_custom_call.1} parent=95 // pred_check
          %p1517 = pneg %p250
        $region98: #{tpu_custom_call.1} parent=95 // pred_check_branch
          %1519 = sbr.rel (%p1517) target = $region100
        $region99: #{tpu_custom_call.1} parent=95 // pred_region
          %s1520 = sand.u32 %s235, 1
          %s1521 = scalar_lea.sflag [#allocation4], %s1520
          %s1522 = sand.u32 %s235, 1
          %s1523 = smul.addr %s1522, 8
          %s1524 = scalar_lea.vmem [#allocation16], %s1523
          %1525 = dma.done %s1521, 128
        $region100: #{tpu_custom_call.1} parent=95 // pred_fallthru
          _
        // Predicated region
        $region101: #{tpu_custom_call.1} parent=95 // pred_check
          %p1526 = pneg %p276
        $region102: #{tpu_custom_call.1} parent=95 // pred_check_branch
          %1528 = sbr.rel (%p1526) target = $region104
        $region103: #{tpu_custom_call.1} parent=95 // pred_region
          %s1529 = sand.u32 %s261, 1
          %s1530 = scalar_lea.sflag [#allocation18], %s1529
          %s1531 = sand.u32 %s261, 1
          %s1532 = smul.addr %s1531, 8
          %s1533 = scalar_lea.vmem [#allocation17], %s1532
          %1534 = dma.done %s1530, 128
        $region104: #{tpu_custom_call.1} parent=95 // pred_fallthru
          _
      $region96: #{tpu_custom_call.1} parent=5 // pred_fallthru
        _
    $region6: #{tpu_custom_call.1} parent=1 // loop_footer
      %s37 = sadd.s32 1, %s33
    $region7: #{tpu_custom_call.1} parent=1 // loop_footer_branch
      %32 = sbr.rel target = $region3
    $region8: #{tpu_custom_call.1} parent=1 // loop_exit
      _
    %1535 = vsyncpa [#allocation3], 1
    %s1536 = scalar_lea.sflag [#allocation3], 1
    %1537 = vsyncpa %s1536, 1
    %1538 = vsyncpa [#allocation6], 1
    %s1539 = scalar_lea.sflag [#allocation6], 1
    %1540 = vsyncpa %s1539, 1
    %1541 = vsyncpa [#allocation9], 1
    %s1542 = scalar_lea.sflag [#allocation9], 1
    %1543 = vsyncpa %s1542, 1
    %1544 = vsyncpa [#allocation12], 1
    %1545 = vsyncpa [#allocation15], 1
    %1546 = vsyncpa [#allocation4], 1
    %s1547 = scalar_lea.sflag [#allocation4], 1
    %1548 = vsyncpa %s1547, 1
    %1549 = vsyncpa [#allocation18], 1
    %s1550 = scalar_lea.sflag [#allocation18], 1
    %1551 = vsyncpa %s1550, 1

</llo_original>
